<compile_context>
chip_gen: v5e
topology: v5e:2x2
jax: 0.10.0
libtpu: 0.0.40
codegen_flags: <defaults>
</compile_context>

<pallas_src>
import jax
import jax.numpy as jnp
from jax.experimental import pallas as pl
from jax.experimental.pallas import tpu as pltpu


def _crosslingual_kernel(hidden_ref, mask_ref, w_ref, b_ref, clip_ref, sse_ref):
    # hidden_ref: (tb, L, H) f32   mask_ref: (tb, L, 1) f32
    # w_ref: (H, D) f32            b_ref: (1, D) f32      clip_ref: (tb, D) f32
    # sse_ref: (1, 1, D) f32 per-batch-tile partial sum of squared errors.
    hidden = hidden_ref[...]
    mask = mask_ref[...]

    # mask-weighted mean pooling: VPU multiply + sublane reduce over L.
    summed = jnp.sum(hidden * mask, axis=1)                    # (tb, H)
    counts = jnp.maximum(jnp.sum(mask, axis=1), 1e-9)          # (tb, 1)  clamp(min=1e-9)
    pooled = summed * pl.reciprocal(counts, approx=True)       # (tb, H)

    # text_projection: nn.Linear(H -> D) on the MXU, f32 accumulation.
    proj = jnp.dot(pooled, w_ref[...],
                   preferred_element_type=jnp.float32) + b_ref[...]

    # y_pred = proj / (||proj|| + 1e-8)        (reciprocal on the EUP slot)
    pnorm = jnp.sqrt(jnp.sum(proj * proj, axis=1, keepdims=True))
    y_pred = proj * pl.reciprocal(pnorm + 1e-8, approx=True)

    # y_true = clip / (||clip|| + 1e-8)
    clip = clip_ref[...]
    cnorm = jnp.sqrt(jnp.sum(clip * clip, axis=1, keepdims=True))
    y_true = clip * pl.reciprocal(cnorm + 1e-8, approx=True)

    # Lane-dense partial: reduce squared error over the batch rows only; the
    # wrapper reduces lanes / tiles and divides by B*D (MSELoss mean).
    diff = y_pred - y_true
    sse_ref[...] = jnp.sum(diff * diff, axis=0).reshape(1, 1, -1)


def _vmem_limit_bytes():
    """~3/4 of physical VMEM: 48 MiB on v7x (64 MiB), 96 MiB on v5e/v6e (128 MiB)."""
    try:
        cap = int(pltpu.get_tpu_info().vmem_capacity_bytes)
    except Exception:
        cap = 64 * 1024 * 1024          # conservative (v7x-sized) fallback
    return (cap * 3) // 4


def _round_up(n, m):
    return -(-n // m) * m


def _tile_vmem_bytes(tb, L, H, D):
    """Conservative VMEM footprint of one grid step (all specs double-buffered)."""
    lp = _round_up(L, 8)
    hidden_buf = 2 * tb * lp * H * 4
    prod_tmp = tb * lp * H * 4                # hidden*mask temporary
    mask_buf = 2 * tb * lp * 128 * 4          # trailing dim 1 pads to a lane tile
    clip_buf = 2 * _round_up(tb, 8) * D * 4
    w_buf = 2 * _round_up(H, 8) * D * 4
    b_buf = 2 * 8 * D * 4
    out_buf = 2 * 8 * D * 4
    return hidden_buf + prod_tmp + mask_buf + clip_buf + w_buf + b_buf + out_buf


def _pick_tb(B, L, H, D, budget):
    cands = sorted([t for t in range(8, min(B, 256) + 1, 8) if B % t == 0],
                   reverse=True)
    # Prefer nb >= 2 (lets the "parallel" batch axis shard across v7x's 2 TCs),
    # then the largest batch tile that fits the VMEM budget.
    for need_multi in (True, False):
        for t in cands:
            if need_multi and B // t < 2:
                continue
            if _tile_vmem_bytes(t, L, H, D) <= budget:
                return t
    # TODO(synk): very long sequences (minimum tile over budget) would need the
    # L grid axis + accumulator variant back; not required for max_length=64.
    raise ValueError("no batch tile fits the VMEM budget; sequence too long")


def crosslingual_loss(hidden, mask, w, b, clip_emb, *, tb=None, vmem_limit_bytes=None):
    """MSE(L2norm(Linear(mean_pool(hidden, mask))), L2norm(clip_emb))."""
    B, L, H = hidden.shape
    D = w.shape[1]
    assert B % 8 == 0, B
    assert H % 128 == 0 and D % 128 == 0, (H, D)

    if vmem_limit_bytes is None:
        vmem_limit_bytes = _vmem_limit_bytes()
    if tb is None:
        tb = _pick_tb(B, L, H, D, (vmem_limit_bytes * 9) // 10)
    assert B % tb == 0 and tb % 8 == 0, (B, tb)
    nb = B // tb

    hidden = hidden.astype(jnp.float32)                 # f32 end-to-end
    mask3 = mask.astype(jnp.float32).reshape(B, L, 1)   # lane-broadcastable in-kernel
    w = w.astype(jnp.float32)
    b = b.astype(jnp.float32).reshape(1, D)
    clip_emb = clip_emb.astype(jnp.float32)

    partials = pl.pallas_call(
        _crosslingual_kernel,
        out_shape=jax.ShapeDtypeStruct((nb, 1, D), jnp.float32),
        grid_spec=pltpu.PrefetchScalarGridSpec(
            num_scalar_prefetch=0,
            grid=(nb,),
            in_specs=[
                pl.BlockSpec((tb, L, H), lambda bi: (bi, 0, 0)),   # hidden (streamed)
                pl.BlockSpec((tb, L, 1), lambda bi: (bi, 0, 0)),   # attention mask
                pl.BlockSpec((H, D), lambda bi: (0, 0)),           # projection W (resident)
                pl.BlockSpec((1, D), lambda bi: (0, 0)),           # projection bias
                pl.BlockSpec((tb, D), lambda bi: (bi, 0)),         # clip text embeddings
            ],
            out_specs=pl.BlockSpec((1, 1, D), lambda bi: (bi, 0, 0)),
        ),
        compiler_params=pltpu.CompilerParams(
            dimension_semantics=("parallel",),
            vmem_limit_bytes=int(vmem_limit_bytes),
        ),
    )(hidden, mask3, w, b, clip_emb)

    # nn.MSELoss() default reduction: mean over all B*D elements.
    return jnp.sum(partials) / (B * D)


def reference_loss(hidden, mask, w, b, clip_emb):
    mask_e = mask[:, :, None]
    pooled = jnp.sum(hidden * mask_e, axis=1) / jnp.maximum(
        jnp.sum(mask, axis=1, keepdims=True), 1e-9)
    proj = pooled @ w + b
    y_pred = proj / (jnp.linalg.norm(proj, axis=1, keepdims=True) + 1e-8)
    y_true = clip_emb / (jnp.linalg.norm(clip_emb, axis=1, keepdims=True) + 1e-8)
    return jnp.mean((y_pred - y_true) ** 2)


if __name__ == "__main__":
    # Small, module-consistent shapes: batch=16, seq=64 (max_length=64),
    # text hidden=256 (stand-in for phobert's 768), projection_dim=128.
    B, L, H, D = 16, 64, 256, 128

    key = jax.random.PRNGKey(0)
    k_h, k_w, k_b, k_c = jax.random.split(key, 4)

    # Precomputed phobert last_hidden_state (external encoder output).
    hidden = jax.random.normal(k_h, (B, L, H), dtype=jnp.float32)

    # Deterministic attention mask: first (8 + 3*i) tokens valid for row i.
    lengths = 8 + 3 * jnp.arange(B)
    mask = (jnp.arange(L)[None, :] < lengths[:, None]).astype(jnp.float32)

    # text_projection parameters (nn.Linear(H, D)), deterministic init.
    w = jax.random.normal(k_w, (H, D), dtype=jnp.float32) * 0.02
    b = jax.random.normal(k_b, (1, D), dtype=jnp.float32) * 0.02

    # CLIP/SigLIP text-tower output embeddings for text_2 (external encoder).
    clip_emb = jax.random.normal(k_c, (B, D), dtype=jnp.float32)

    loss = crosslingual_loss(hidden, mask, w, b, clip_emb)
    loss = jax.block_until_ready(loss)

    ref = reference_loss(hidden, mask, w, b, clip_emb)
    assert jnp.allclose(loss, ref, rtol=2e-3, atol=1e-6), (loss, ref)

    print("KERNEL_OK")
</pallas_src>

<mosaic_0001>
module attributes {stable_mosaic.version = 11 : i64} {
  func.func @_crosslingual_kernel(%arg0: i32, %arg1: memref<8x64x256xf32, #tpu.memory_space<vmem>>, %arg2: memref<8x64x1xf32, #tpu.memory_space<vmem>>, %arg3: memref<256x128xf32, #tpu.memory_space<vmem>>, %arg4: memref<1x128xf32, #tpu.memory_space<vmem>>, %arg5: memref<8x128xf32, #tpu.memory_space<vmem>>, %arg6: memref<1x1x128xf32, #tpu.memory_space<vmem>>) attributes {dimension_semantics = [#tpu.dimension_semantics<parallel>], iteration_bounds = array<i64: 2>, scalar_prefetch = 0 : i64, scratch_operands = 0 : i64, tpu.core_type = #tpu.core_type<tc>, window_params = [{transform_indices = @transform_0, window_bounds = array<i64: 8, 64, 256>}, {transform_indices = @transform_1, window_bounds = array<i64: 8, 64, 1>}, {pipeline_mode = #tpu.pipeline_mode<synchronous>, transform_indices = @transform_2, window_bounds = array<i64: 256, 128>}, {pipeline_mode = #tpu.pipeline_mode<synchronous>, transform_indices = @transform_3, window_bounds = array<i64: 1, 128>}, {transform_indices = @transform_4, window_bounds = array<i64: 8, 128>}, {transform_indices = @transform_5, window_bounds = array<i64: 1, 1, 128>}]} {
    %c0 = arith.constant 0 : index
    %c0_0 = arith.constant 0 : index
    %c0_1 = arith.constant 0 : index
    %0 = vector.load %arg1[%c0, %c0_0, %c0_1] : memref<8x64x256xf32, #tpu.memory_space<vmem>>, vector<8x64x256xf32>
    %c0_2 = arith.constant 0 : index
    %c0_3 = arith.constant 0 : index
    %c0_4 = arith.constant 0 : index
    %1 = vector.load %arg2[%c0_2, %c0_3, %c0_4] : memref<8x64x1xf32, #tpu.memory_space<vmem>>, vector<8x64x1xf32>
    %2 = vector.broadcast %1 : vector<8x64x1xf32> to vector<8x64x256xf32>
    %3 = arith.mulf %0, %2 : vector<8x64x256xf32>
    %cst = arith.constant dense<0.000000e+00> : vector<8x256xf32>
    %4 = vector.multi_reduction <add>, %3, %cst [1] : vector<8x64x256xf32> to vector<8x256xf32>
    %cst_5 = arith.constant dense<0.000000e+00> : vector<8x1xf32>
    %5 = vector.multi_reduction <add>, %1, %cst_5 [1] : vector<8x64x1xf32> to vector<8x1xf32>
    %cst_6 = arith.constant 9.99999971E-10 : f32
    %6 = vector.broadcast %cst_6 : f32 to vector<8x1xf32>
    %7 = arith.maximumf %5, %6 : vector<8x1xf32>
    %8 = tpu.reciprocal %7 {approx = true} : vector<8x1xf32> -> vector<8x1xf32>
    %9 = vector.broadcast %8 : vector<8x1xf32> to vector<8x256xf32>
    %10 = arith.mulf %4, %9 : vector<8x256xf32>
    %c0_7 = arith.constant 0 : index
    %c0_8 = arith.constant 0 : index
    %11 = vector.load %arg3[%c0_7, %c0_8] : memref<256x128xf32, #tpu.memory_space<vmem>>, vector<256x128xf32>
    %cst_9 = arith.constant dense<0.000000e+00> : vector<8x128xf32>
    %12 = tpu.matmul %10, %11, %cst_9 {dimension_numbers = #tpu.dot_dimension_numbers<[1], [0], [0], [1], [0, 0, 1, 1], [], []>} : vector<8x256xf32>, vector<256x128xf32>, vector<8x128xf32> -> vector<8x128xf32>
    %c0_10 = arith.constant 0 : index
    %c0_11 = arith.constant 0 : index
    %13 = vector.load %arg4[%c0_10, %c0_11] : memref<1x128xf32, #tpu.memory_space<vmem>>, vector<1x128xf32>
    %14 = vector.broadcast %13 : vector<1x128xf32> to vector<8x128xf32>
    %15 = arith.addf %12, %14 : vector<8x128xf32>
    %16 = arith.mulf %15, %15 : vector<8x128xf32>
    %cst_12 = arith.constant dense<0.000000e+00> : vector<8xf32>
    %17 = vector.multi_reduction <add>, %16, %cst_12 [1] : vector<8x128xf32> to vector<8xf32>
    %18 = vector.shape_cast %17 : vector<8xf32> to vector<8x1xf32>
    %19 = math.sqrt %18 : vector<8x1xf32>
    %cst_13 = arith.constant 9.99999993E-9 : f32
    %20 = vector.broadcast %cst_13 : f32 to vector<8x1xf32>
    %21 = arith.addf %19, %20 : vector<8x1xf32>
    %22 = tpu.reciprocal %21 {approx = true} : vector<8x1xf32> -> vector<8x1xf32>
    %23 = vector.broadcast %22 : vector<8x1xf32> to vector<8x128xf32>
    %24 = arith.mulf %15, %23 : vector<8x128xf32>
    %c0_14 = arith.constant 0 : index
    %c0_15 = arith.constant 0 : index
    %25 = vector.load %arg5[%c0_14, %c0_15] : memref<8x128xf32, #tpu.memory_space<vmem>>, vector<8x128xf32>
    %26 = arith.mulf %25, %25 : vector<8x128xf32>
    %cst_16 = arith.constant dense<0.000000e+00> : vector<8xf32>
    %27 = vector.multi_reduction <add>, %26, %cst_16 [1] : vector<8x128xf32> to vector<8xf32>
    %28 = vector.shape_cast %27 : vector<8xf32> to vector<8x1xf32>
    %29 = math.sqrt %28 : vector<8x1xf32>
    %cst_17 = arith.constant 9.99999993E-9 : f32
    %30 = vector.broadcast %cst_17 : f32 to vector<8x1xf32>
    %31 = arith.addf %29, %30 : vector<8x1xf32>
    %32 = tpu.reciprocal %31 {approx = true} : vector<8x1xf32> -> vector<8x1xf32>
    %33 = vector.broadcast %32 : vector<8x1xf32> to vector<8x128xf32>
    %34 = arith.mulf %25, %33 : vector<8x128xf32>
    %35 = arith.subf %24, %34 : vector<8x128xf32>
    %36 = arith.mulf %35, %35 : vector<8x128xf32>
    %cst_18 = arith.constant dense<0.000000e+00> : vector<128xf32>
    %37 = vector.multi_reduction <add>, %36, %cst_18 [0] : vector<8x128xf32> to vector<128xf32>
    %38 = vector.shape_cast %37 : vector<128xf32> to vector<1x1x128xf32>
    %c0_19 = arith.constant 0 : index
    %c0_20 = arith.constant 0 : index
    %c0_21 = arith.constant 0 : index
    %39 = vector.load %arg6[%c0_19, %c0_20, %c0_21] : memref<1x1x128xf32, #tpu.memory_space<vmem>>, vector<1x1x128xf32>
    tpu.vector_store %arg6[%c0_19, %c0_20, %c0_21], %38 {strides = array<i32>} : memref<1x1x128xf32, #tpu.memory_space<vmem>>, vector<1x1x128xf32>,
    return
  }
  func.func @transform_0(%arg0: i32) -> (i32, i32, i32) {
    %c0_i32 = arith.constant 0 : i32
    %c0_i32_0 = arith.constant 0 : i32
    %c0_i32_1 = arith.constant 0 : i32
    return %arg0, %c0_i32, %c0_i32_0 : i32, i32, i32
  }
  func.func @transform_1(%arg0: i32) -> (i32, i32, i32) {
    %c0_i32 = arith.constant 0 : i32
    %c0_i32_0 = arith.constant 0 : i32
    %c0_i32_1 = arith.constant 0 : i32
    return %arg0, %c0_i32, %c0_i32_0 : i32, i32, i32
  }
  func.func @transform_2(%arg0: i32) -> (i32, i32) {
    %c0_i32 = arith.constant 0 : i32
    %c0_i32_0 = arith.constant 0 : i32
    %c0_i32_1 = arith.constant 0 : i32
    return %c0_i32, %c0_i32_0 : i32, i32
  }
  func.func @transform_3(%arg0: i32) -> (i32, i32) {
    %c0_i32 = arith.constant 0 : i32
    %c0_i32_0 = arith.constant 0 : i32
    %c0_i32_1 = arith.constant 0 : i32
    return %c0_i32, %c0_i32_0 : i32, i32
  }
  func.func @transform_4(%arg0: i32) -> (i32, i32) {
    %c0_i32 = arith.constant 0 : i32
    %c0_i32_0 = arith.constant 0 : i32
    return %arg0, %c0_i32 : i32, i32
  }
  func.func @transform_5(%arg0: i32) -> (i32, i32, i32) {
    %c0_i32 = arith.constant 0 : i32
    %c0_i32_0 = arith.constant 0 : i32
    %c0_i32_1 = arith.constant 0 : i32
    return %arg0, %c0_i32, %c0_i32_0 : i32, i32, i32
  }
}

</mosaic_0001>

<llo_original>
// kernel: tpu_custom_call.1
$region0: #{tpu_custom_call.1}
  #allocation0 [shape = 'u32[]', space=smem, size = 0x4, offset = 0x4, fixed_abs, tag = 'smem constant byte address 0x4 - core index']
  #allocation1 [shape = 'u32[72,128]{1,0:T(1,128)}', space=vmem, size = 0x9000, scoped, tag = 'internal scratch']
  %s0 = inlined_call_operand.hbm [shape: f32[16,64,256], index: 0, kind: input, shape index: {}]
  %s1 = inlined_call_operand.vmem [shape: f32[16,64,1], index: 1, kind: input, shape index: {}]
  %s2 = inlined_call_operand.vmem [shape: f32[256,128], index: 2, kind: input, shape index: {}]
  %s3 = inlined_call_operand.vmem [shape: f32[1,128], index: 3, kind: input, shape index: {}]
  %s4 = inlined_call_operand.vmem [shape: f32[16,128], index: 4, kind: input, shape index: {}]
  %s5 = inlined_call_operand.hbm [shape: f32[2,1,128], index: 5, kind: output, shape index: {}]
  %s6 = sld [smem:[#allocation0]]
  $region57: #{tpu_custom_call.1} parent=0
    _
  %s8 = ssub.s32 1, %s6
  %s9 = scalar_select 0, %s8, %s6
  $region1: #{tpu_custom_call.1} parent=0
    #allocation2 [shape = 'u8[1048576]{0}', space=vmem, size = 0x100000, scoped, tag = 'input window, operand 0']
    #allocation3 [shape = 's32[2]{0}', space=sflag, size = 0x8, scoped, tag = 'scoped memory for tpu_custom_call.1']
    #allocation4 [shape = 's32[2]{0}', space=sflag, size = 0x8, scoped, tag = 'scoped memory for tpu_custom_call.1']
    #allocation5 [shape = 'u8[1024]{0}', space=vmem, size = 0x400, scoped, tag = 'output window, operand 0']
    %10 = vsyncpa [#allocation3], 0
    %s11 = scalar_lea.sflag [#allocation3], 1
    %12 = vsyncpa %s11, 0
    %13 = vsyncpa [#allocation4], 0
    %s14 = scalar_lea.sflag [#allocation4], 1
    %15 = vsyncpa %s14, 0
    loop: start=0, step=1, limit=4
    $region2: #{tpu_custom_call.1} parent=1 // loop_pre_header
      _
    $region3: #{tpu_custom_call.1} parent=1 // loop_header
      %s17 = sphi 0, %s21
      %p18 = scmp.ge.s32.totalorder %s17, 4
      %s27 = sphi 0, %s29
      %s30 = sphi 0, %s27
      %s31 = sphi 0, %s30
      %s47 = sphi 0, %s31
      %s53 = sphi 0, %s55
      %s56 = sphi 0, %s53
      %s57 = sphi 0, %s56
      %s73 = sphi 0, %s57
      %s77 = sphi 0, %s77
      %s79 = sphi 0, %s77
      %s80 = sphi 0, %s79
      %s94 = sphi 0, %s80
      %s98 = sphi 0, %s98
      %s100 = sphi 0, %s98
      %s101 = sphi 0, %s100
      %s115 = sphi 0, %s101
      %s121 = sphi 0, %s123
      %s124 = sphi 0, %s121
      %s125 = sphi 0, %s124
      %s141 = sphi 0, %s125
      %s147 = sphi 0, %s149
      %s150 = sphi 0, %s147
      %s151 = sphi 0, %s150
      %s167 = sphi 0, %s151
    $region4: #{tpu_custom_call.1} parent=1 // loop_header_branch
      %20 = sbr.rel (%p18) target = $region8
    $region5: #{tpu_custom_call.1} parent=1 // loop_body
      %s22 = ssub.s32 %s17, 1
      %s23 = ssub.s32 %s17, 2
      %s24 = sadd.s32 %s17, 1
      %s25 = ssub.s32 %s17, %s24
      %p26 = scmp.eq.s32.totalorder %s25, 0
      %s28 = sadd.s32 %s27, 1
      %s29 = scalar_select %p26, %s27, %s28
      %p32 = pneg %p26
      %p33 = scmp.eq.s32.totalorder %s17, 1
      %p34 = por %p32, %p33
      %p35 = scmp.ne.s32.totalorder %s27, %s30
      %p36 = scmp.eq.s32.totalorder %s17, 0
      %p37 = por %p35, %p36
      %p38 = scmp.ne.s32.totalorder %s27, %s30
      %p39 = scmp.eq.s32.totalorder %s22, 1
      %p40 = por %p38, %p39
      %p41 = scmp.ne.s32.totalorder %s30, %s31
      %p42 = scmp.eq.s32.totalorder %s22, 0
      %p43 = por %p41, %p42
      %p44 = scmp.ne.s32.totalorder %s30, %s31
      %p45 = scmp.eq.s32.totalorder %s23, 1
      %p46 = por %p44, %p45
      %p48 = scmp.ne.s32.totalorder %s31, %s47
      %p49 = scmp.eq.s32.totalorder %s23, 0
      %p50 = por %p48, %p49
      %s51 = ssub.s32 %s17, %s24
      %p52 = scmp.eq.s32.totalorder %s51, 0
      %s54 = sadd.s32 %s53, 1
      %s55 = scalar_select %p52, %s53, %s54
      %p58 = pneg %p52
      %p59 = scmp.eq.s32.totalorder %s17, 1
      %p60 = por %p58, %p59
      %p61 = scmp.ne.s32.totalorder %s53, %s56
      %p62 = scmp.eq.s32.totalorder %s17, 0
      %p63 = por %p61, %p62
      %p64 = scmp.ne.s32.totalorder %s53, %s56
      %p65 = scmp.eq.s32.totalorder %s22, 1
      %p66 = por %p64, %p65
      %p67 = scmp.ne.s32.totalorder %s56, %s57
      %p68 = scmp.eq.s32.totalorder %s22, 0
      %p69 = por %p67, %p68
      %p70 = scmp.ne.s32.totalorder %s56, %s57
      %p71 = scmp.eq.s32.totalorder %s23, 1
      %p72 = por %p70, %p71
      %p74 = scmp.ne.s32.totalorder %s57, %s73
      %p75 = scmp.eq.s32.totalorder %s23, 0
      %p76 = por %p74, %p75
      %s78 = sadd.s32 %s77, 1
      %p81 = scmp.eq.s32.totalorder %s17, 1
      %p82 = scmp.ne.s32.totalorder %s77, %s79
      %p83 = scmp.eq.s32.totalorder %s17, 0
      %p84 = por %p82, %p83
      %p85 = scmp.ne.s32.totalorder %s77, %s79
      %p86 = scmp.eq.s32.totalorder %s22, 1
      %p87 = por %p85, %p86
      %p88 = scmp.ne.s32.totalorder %s79, %s80
      %p89 = scmp.eq.s32.totalorder %s22, 0
      %p90 = por %p88, %p89
      %p91 = scmp.ne.s32.totalorder %s79, %s80
      %p92 = scmp.eq.s32.totalorder %s23, 1
      %p93 = por %p91, %p92
      %p95 = scmp.ne.s32.totalorder %s80, %s94
      %p96 = scmp.eq.s32.totalorder %s23, 0
      %p97 = por %p95, %p96
      %s99 = sadd.s32 %s98, 1
      %p102 = scmp.eq.s32.totalorder %s17, 1
      %p103 = scmp.ne.s32.totalorder %s98, %s100
      %p104 = scmp.eq.s32.totalorder %s17, 0
      %p105 = por %p103, %p104
      %p106 = scmp.ne.s32.totalorder %s98, %s100
      %p107 = scmp.eq.s32.totalorder %s22, 1
      %p108 = por %p106, %p107
      %p109 = scmp.ne.s32.totalorder %s100, %s101
      %p110 = scmp.eq.s32.totalorder %s22, 0
      %p111 = por %p109, %p110
      %p112 = scmp.ne.s32.totalorder %s100, %s101
      %p113 = scmp.eq.s32.totalorder %s23, 1
      %p114 = por %p112, %p113
      %p116 = scmp.ne.s32.totalorder %s101, %s115
      %p117 = scmp.eq.s32.totalorder %s23, 0
      %p118 = por %p116, %p117
      %s119 = ssub.s32 %s17, %s24
      %p120 = scmp.eq.s32.totalorder %s119, 0
      %s122 = sadd.s32 %s121, 1
      %s123 = scalar_select %p120, %s121, %s122
      %p126 = pneg %p120
      %p127 = scmp.eq.s32.totalorder %s17, 1
      %p128 = por %p126, %p127
      %p129 = scmp.ne.s32.totalorder %s121, %s124
      %p130 = scmp.eq.s32.totalorder %s17, 0
      %p131 = por %p129, %p130
      %p132 = scmp.ne.s32.totalorder %s121, %s124
      %p133 = scmp.eq.s32.totalorder %s22, 1
      %p134 = por %p132, %p133
      %p135 = scmp.ne.s32.totalorder %s124, %s125
      %p136 = scmp.eq.s32.totalorder %s22, 0
      %p137 = por %p135, %p136
      %p138 = scmp.ne.s32.totalorder %s124, %s125
      %p139 = scmp.eq.s32.totalorder %s23, 1
      %p140 = por %p138, %p139
      %p142 = scmp.ne.s32.totalorder %s125, %s141
      %p143 = scmp.eq.s32.totalorder %s23, 0
      %p144 = por %p142, %p143
      %s145 = ssub.s32 %s17, %s24
      %p146 = scmp.eq.s32.totalorder %s145, 0
      %s148 = sadd.s32 %s147, 1
      %s149 = scalar_select %p146, %s147, %s148
      %p152 = pneg %p146
      %p153 = scmp.eq.s32.totalorder %s17, 1
      %p154 = por %p152, %p153
      %p155 = scmp.ne.s32.totalorder %s147, %s150
      %p156 = scmp.eq.s32.totalorder %s17, 0
      %p157 = por %p155, %p156
      %p158 = scmp.ne.s32.totalorder %s147, %s150
      %p159 = scmp.eq.s32.totalorder %s22, 1
      %p160 = por %p158, %p159
      %p161 = scmp.ne.s32.totalorder %s150, %s151
      %p162 = scmp.eq.s32.totalorder %s22, 0
      %p163 = por %p161, %p162
      %p164 = scmp.ne.s32.totalorder %s150, %s151
      %p165 = scmp.eq.s32.totalorder %s23, 1
      %p166 = por %p164, %p165
      %p168 = scmp.ne.s32.totalorder %s151, %s167
      %p169 = scmp.eq.s32.totalorder %s23, 0
      %p170 = por %p168, %p169
      %p171 = scmp.le.s32.totalorder 1, %s17
      %p172 = scmp.lt.s32.totalorder %s17, 3
      %p173 = pnand %p171, %p172
      %p174 = pneg %p173
      // Predicated region
      $region9: #{tpu_custom_call.1} parent=5 // pred_check
        _
      $region10: #{tpu_custom_call.1} parent=5 // pred_check_branch
        %176 = sbr.rel (%p173) target = $region12
      $region11: #{tpu_custom_call.1} parent=5 // pred_region
        %s177 = ssub.s32 %s17, 1
        // Predicated region
        $region13: #{tpu_custom_call.1} parent=11 // pred_check
          %p178 = pneg %p90
        $region14: #{tpu_custom_call.1} parent=11 // pred_check_branch
          %180 = sbr.rel (%p178) target = $region16
        $region15: #{tpu_custom_call.1} parent=11 // pred_region
          _
        $region16: #{tpu_custom_call.1} parent=11 // pred_fallthru
          _
        // Predicated region
        $region17: #{tpu_custom_call.1} parent=11 // pred_check
          %p181 = pneg %p111
        $region18: #{tpu_custom_call.1} parent=11 // pred_check_branch
          %183 = sbr.rel (%p181) target = $region20
        $region19: #{tpu_custom_call.1} parent=11 // pred_region
          _
        $region20: #{tpu_custom_call.1} parent=11 // pred_fallthru
          _
      $region12: #{tpu_custom_call.1} parent=5 // pred_fallthru
        _
      %p184 = scmp.lt.s32.totalorder %s17, 2
      // Predicated region
      $region21: #{tpu_custom_call.1} parent=5 // pred_check
        %p185 = pneg %p184
      $region22: #{tpu_custom_call.1} parent=5 // pred_check_branch
        %187 = sbr.rel (%p185) target = $region24
      $region23: #{tpu_custom_call.1} parent=5 // pred_region
        // Predicated region
        $region25: #{tpu_custom_call.1} parent=23 // pred_check
          %p188 = pneg %p37
        $region26: #{tpu_custom_call.1} parent=23 // pred_check_branch
          %190 = sbr.rel (%p188) target = $region28
        $region27: #{tpu_custom_call.1} parent=23 // pred_region
          %s191 = sand.u32 %s27, 1
          %s192 = scalar_lea.sflag [#allocation3], %s191
          %s193 = sand.u32 %s27, 1
          %s194 = smul.addr %s193, 1024
          %s195 = scalar_lea.vmem [#allocation2], %s194
          %s196 = smul.u32 8, %s17
          %198 = vsyncadd %s192, 0
          %s199 = smul.addr %s196, 16
          %s200 = smul.addr %s199, 8
          %s201 = scalar_lea.hbm %s0, %s200
          %s202 = sshll.u32 %s201, 4
          %s203 = int_to_ptr.hbm [resolvable:$true] %s202
          %s204 = sshll.u32 %s195, 4
          %s205 = int_to_ptr.vmem [resolvable:$true] %s204
          %210 = dma.hbm_to_vmem [thread:$0]  %s203, 16384, %s205, %s192, 256, 256, 16
        $region28: #{tpu_custom_call.1} parent=23 // pred_fallthru
          _
        // Predicated region
        $region29: #{tpu_custom_call.1} parent=23 // pred_check
          %p211 = pneg %p63
        $region30: #{tpu_custom_call.1} parent=23 // pred_check_branch
          %213 = sbr.rel (%p211) target = $region32
        $region31: #{tpu_custom_call.1} parent=23 // pred_region
          %s214 = smul.u32 8, %s17
          %p215 = scmp.lt.s32.totalorder %s214, 15
          %s216 = scalar_select %p215, %s214, 15
          %s217 = smul.addr %s216, 8
          %s218 = smul.addr %s217, 8
          %s219 = scalar_lea.vmem %s1, %s218
          %s220 = smul.u32 8, %s17
        $region32: #{tpu_custom_call.1} parent=23 // pred_fallthru
          _
        // Predicated region
        $region33: #{tpu_custom_call.1} parent=23 // pred_check
          %p221 = pneg %p131
        $region34: #{tpu_custom_call.1} parent=23 // pred_check_branch
          %223 = sbr.rel (%p221) target = $region36
        $region35: #{tpu_custom_call.1} parent=23 // pred_region
          %p224 = scmp.lt.s32.totalorder %s17, 1
          %s225 = scalar_select %p224, %s17, 1
          %s226 = smul.addr %s225, 8
          %s227 = scalar_lea.vmem %s4, %s226
        $region36: #{tpu_custom_call.1} parent=23 // pred_fallthru
          _
      $region24: #{tpu_custom_call.1} parent=5 // pred_fallthru
        _
      %p228 = scmp.le.s32.totalorder 1, %s17
      %p229 = scmp.lt.s32.totalorder %s17, 3
      %p230 = pnand %p228, %p229
      %p231 = pneg %p230
      // Predicated region
      $region37: #{tpu_custom_call.1} parent=5 // pred_check
        _
      $region38: #{tpu_custom_call.1} parent=5 // pred_check_branch
        %233 = sbr.rel (%p230) target = $region40
      $region39: #{tpu_custom_call.1} parent=5 // pred_region
        %s234 = ssub.s32 %s17, 1
        %s235 = sand.u32 %s30, 1
        %s236 = scalar_lea.sflag [#allocation3], %s235
        %s237 = sand.u32 %s30, 1
        %s238 = smul.addr %s237, 1024
        %s239 = scalar_lea.vmem [#allocation2], %s238
        // Predicated region
        $region41: #{tpu_custom_call.1} parent=39 // pred_check
          %p240 = pneg %p43
        $region42: #{tpu_custom_call.1} parent=39 // pred_check_branch
          %242 = sbr.rel (%p240) target = $region44
        $region43: #{tpu_custom_call.1} parent=39 // pred_region
          %244 = dma.done %s236, 16384
        $region44: #{tpu_custom_call.1} parent=39 // pred_fallthru
          _
        %s245 = sand.u32 %s30, 1
        %s246 = scalar_lea.sflag [#allocation3], %s245
        %s247 = sand.u32 %s30, 1
        %s248 = smul.addr %s247, 1024
        %s249 = scalar_lea.vmem [#allocation2], %s248
        %p250 = pneg %p43
        %p251 = pneg %p40
        %s252 = smul.u32 8, %s22
        %p253 = scmp.lt.s32.totalorder %s252, 15
        %s254 = scalar_select %p253, %s252, 15
        %s255 = smul.addr %s254, 8
        %s256 = smul.addr %s255, 8
        %s257 = scalar_lea.vmem %s1, %s256
        %p258 = pneg %p69
        %p259 = pneg %p66
        %p260 = pneg %p90
        %p261 = pneg %p87
        %p262 = pneg %p111
        %p263 = pneg %p108
        %p264 = scmp.lt.s32.totalorder %s22, 1
        %s265 = scalar_select %p264, %s22, 1
        %s266 = smul.addr %s265, 8
        %s267 = scalar_lea.vmem %s4, %s266
        %p268 = pneg %p137
        %p269 = pneg %p134
        %p270 = pneg %p163
        %p271 = pneg %p160
        %s272 = sand.u32 %s150, 1
        %s273 = scalar_lea.sflag [#allocation4], %s272
        %s274 = sand.u32 %s150, 1
        %s275 = scalar_lea.vmem [#allocation5], %s274
        %s276 = smul.u32 8, %s22
        %s277 = smul.u32 8, %s22
        %p278 = scmp.lt.s32.totalorder %s277, 15
        %s279 = scalar_select %p278, %s277, 15
        %s280 = smul.addr %s279, 8
        %s281 = smul.addr %s280, 8
        %s282 = scalar_lea.vmem %s1, %s281
        %s283 = smul.u32 8, %s22
        %p284 = scmp.lt.s32.totalorder %s22, 1
        %s285 = scalar_select %p284, %s22, 1
        %s286 = smul.addr %s285, 8
        %s287 = scalar_lea.vmem %s4, %s286
        %v288 = vld [vmem:[%s239] sm:$0xff]
        %v289 = vld [vmem:[%s239 + $0x8] sm:$0xff]
        %v290 = vld [vmem:[%s239 + $0x10] sm:$0xff]
        %v291 = vld [vmem:[%s239 + $0x18] sm:$0xff]
        %v292 = vld [vmem:[%s239 + $0x20] sm:$0xff]
        %v293 = vld [vmem:[%s239 + $0x28] sm:$0xff]
        %v294 = vld [vmem:[%s239 + $0x30] sm:$0xff]
        %v295 = vld [vmem:[%s239 + $0x38] sm:$0xff]
        %v296 = vld [vmem:[%s239 + $0x40] sm:$0xff]
        %v297 = vld [vmem:[%s239 + $0x48] sm:$0xff]
        %v298 = vld [vmem:[%s239 + $0x50] sm:$0xff]
        %v299 = vld [vmem:[%s239 + $0x58] sm:$0xff]
        %v300 = vld [vmem:[%s239 + $0x60] sm:$0xff]
        %v301 = vld [vmem:[%s239 + $0x68] sm:$0xff]
        %v302 = vld [vmem:[%s239 + $0x70] sm:$0xff]
        %v303 = vld [vmem:[%s239 + $0x78] sm:$0xff]
        %v304 = vld [vmem:[%s239 + $0x80] sm:$0xff]
        %v305 = vld [vmem:[%s239 + $0x88] sm:$0xff]
        %v306 = vld [vmem:[%s239 + $0x90] sm:$0xff]
        %v307 = vld [vmem:[%s239 + $0x98] sm:$0xff]
        %v308 = vld [vmem:[%s239 + $0xa0] sm:$0xff]
        %v309 = vld [vmem:[%s239 + $0xa8] sm:$0xff]
        %v310 = vld [vmem:[%s239 + $0xb0] sm:$0xff]
        %v311 = vld [vmem:[%s239 + $0xb8] sm:$0xff]
        %v312 = vld [vmem:[%s239 + $0xc0] sm:$0xff]
        %v313 = vld [vmem:[%s239 + $0xc8] sm:$0xff]
        %v314 = vld [vmem:[%s239 + $0xd0] sm:$0xff]
        %v315 = vld [vmem:[%s239 + $0xd8] sm:$0xff]
        %v316 = vld [vmem:[%s239 + $0xe0] sm:$0xff]
        %v317 = vld [vmem:[%s239 + $0xe8] sm:$0xff]
        %v318 = vld [vmem:[%s239 + $0xf0] sm:$0xff]
        %v319 = vld [vmem:[%s239 + $0xf8] sm:$0xff]
        %v320 = vld [vmem:[%s239 + $0x100] sm:$0xff]
        %v321 = vld [vmem:[%s239 + $0x108] sm:$0xff]
        %v322 = vld [vmem:[%s239 + $0x110] sm:$0xff]
        %v323 = vld [vmem:[%s239 + $0x118] sm:$0xff]
        %v324 = vld [vmem:[%s239 + $0x120] sm:$0xff]
        %v325 = vld [vmem:[%s239 + $0x128] sm:$0xff]
        %v326 = vld [vmem:[%s239 + $0x130] sm:$0xff]
        %v327 = vld [vmem:[%s239 + $0x138] sm:$0xff]
        %v328 = vld [vmem:[%s239 + $0x140] sm:$0xff]
        %v329 = vld [vmem:[%s239 + $0x148] sm:$0xff]
        %v330 = vld [vmem:[%s239 + $0x150] sm:$0xff]
        %v331 = vld [vmem:[%s239 + $0x158] sm:$0xff]
        %v332 = vld [vmem:[%s239 + $0x160] sm:$0xff]
        %v333 = vld [vmem:[%s239 + $0x168] sm:$0xff]
        %v334 = vld [vmem:[%s239 + $0x170] sm:$0xff]
        %v335 = vld [vmem:[%s239 + $0x178] sm:$0xff]
        %v336 = vld [vmem:[%s239 + $0x180] sm:$0xff]
        %v337 = vld [vmem:[%s239 + $0x188] sm:$0xff]
        %v338 = vld [vmem:[%s239 + $0x190] sm:$0xff]
        %v339 = vld [vmem:[%s239 + $0x198] sm:$0xff]
        %v340 = vld [vmem:[%s239 + $0x1a0] sm:$0xff]
        %v341 = vld [vmem:[%s239 + $0x1a8] sm:$0xff]
        %v342 = vld [vmem:[%s239 + $0x1b0] sm:$0xff]
        %v343 = vld [vmem:[%s239 + $0x1b8] sm:$0xff]
        %v344 = vld [vmem:[%s239 + $0x1c0] sm:$0xff]
        %v345 = vld [vmem:[%s239 + $0x1c8] sm:$0xff]
        %v346 = vld [vmem:[%s239 + $0x1d0] sm:$0xff]
        %v347 = vld [vmem:[%s239 + $0x1d8] sm:$0xff]
        %v348 = vld [vmem:[%s239 + $0x1e0] sm:$0xff]
        %v349 = vld [vmem:[%s239 + $0x1e8] sm:$0xff]
        %v350 = vld [vmem:[%s239 + $0x1f0] sm:$0xff]
        %v351 = vld [vmem:[%s239 + $0x1f8] sm:$0xff]
        %v352 = vld [vmem:[%s239 + $0x200] sm:$0xff]
        %v353 = vld [vmem:[%s239 + $0x208] sm:$0xff]
        %v354 = vld [vmem:[%s239 + $0x210] sm:$0xff]
        %v355 = vld [vmem:[%s239 + $0x218] sm:$0xff]
        %v356 = vld [vmem:[%s239 + $0x220] sm:$0xff]
        %v357 = vld [vmem:[%s239 + $0x228] sm:$0xff]
        %v358 = vld [vmem:[%s239 + $0x230] sm:$0xff]
        %v359 = vld [vmem:[%s239 + $0x238] sm:$0xff]
        %v360 = vld [vmem:[%s239 + $0x240] sm:$0xff]
        %v361 = vld [vmem:[%s239 + $0x248] sm:$0xff]
        %v362 = vld [vmem:[%s239 + $0x250] sm:$0xff]
        %v363 = vld [vmem:[%s239 + $0x258] sm:$0xff]
        %v364 = vld [vmem:[%s239 + $0x260] sm:$0xff]
        %v365 = vld [vmem:[%s239 + $0x268] sm:$0xff]
        %v366 = vld [vmem:[%s239 + $0x270] sm:$0xff]
        %v367 = vld [vmem:[%s239 + $0x278] sm:$0xff]
        %v368 = vld [vmem:[%s239 + $0x280] sm:$0xff]
        %v369 = vld [vmem:[%s239 + $0x288] sm:$0xff]
        %v370 = vld [vmem:[%s239 + $0x290] sm:$0xff]
        %v371 = vld [vmem:[%s239 + $0x298] sm:$0xff]
        %v372 = vld [vmem:[%s239 + $0x2a0] sm:$0xff]
        %v373 = vld [vmem:[%s239 + $0x2a8] sm:$0xff]
        %v374 = vld [vmem:[%s239 + $0x2b0] sm:$0xff]
        %v375 = vld [vmem:[%s239 + $0x2b8] sm:$0xff]
        %v376 = vld [vmem:[%s239 + $0x2c0] sm:$0xff]
        %v377 = vld [vmem:[%s239 + $0x2c8] sm:$0xff]
        %v378 = vld [vmem:[%s239 + $0x2d0] sm:$0xff]
        %v379 = vld [vmem:[%s239 + $0x2d8] sm:$0xff]
        %v380 = vld [vmem:[%s239 + $0x2e0] sm:$0xff]
        %v381 = vld [vmem:[%s239 + $0x2e8] sm:$0xff]
        %v382 = vld [vmem:[%s239 + $0x2f0] sm:$0xff]
        %v383 = vld [vmem:[%s239 + $0x2f8] sm:$0xff]
        %v384 = vld [vmem:[%s239 + $0x300] sm:$0xff]
        %v385 = vld [vmem:[%s239 + $0x308] sm:$0xff]
        %v386 = vld [vmem:[%s239 + $0x310] sm:$0xff]
        %v387 = vld [vmem:[%s239 + $0x318] sm:$0xff]
        %v388 = vld [vmem:[%s239 + $0x320] sm:$0xff]
        %v389 = vld [vmem:[%s239 + $0x328] sm:$0xff]
        %v390 = vld [vmem:[%s239 + $0x330] sm:$0xff]
        %v391 = vld [vmem:[%s239 + $0x338] sm:$0xff]
        %v392 = vld [vmem:[%s239 + $0x340] sm:$0xff]
        %v393 = vld [vmem:[%s239 + $0x348] sm:$0xff]
        %v394 = vld [vmem:[%s239 + $0x350] sm:$0xff]
        %v395 = vld [vmem:[%s239 + $0x358] sm:$0xff]
        %v396 = vld [vmem:[%s239 + $0x360] sm:$0xff]
        %v397 = vld [vmem:[%s239 + $0x368] sm:$0xff]
        %v398 = vld [vmem:[%s239 + $0x370] sm:$0xff]
        %v399 = vld [vmem:[%s239 + $0x378] sm:$0xff]
        %v400 = vld [vmem:[%s239 + $0x380] sm:$0xff]
        %v401 = vld [vmem:[%s239 + $0x388] sm:$0xff]
        %v402 = vld [vmem:[%s239 + $0x390] sm:$0xff]
        %v403 = vld [vmem:[%s239 + $0x398] sm:$0xff]
        %v404 = vld [vmem:[%s239 + $0x3a0] sm:$0xff]
        %v405 = vld [vmem:[%s239 + $0x3a8] sm:$0xff]
        %v406 = vld [vmem:[%s239 + $0x3b0] sm:$0xff]
        %v407 = vld [vmem:[%s239 + $0x3b8] sm:$0xff]
        %v408 = vld [vmem:[%s239 + $0x3c0] sm:$0xff]
        %v409 = vld [vmem:[%s239 + $0x3c8] sm:$0xff]
        %v410 = vld [vmem:[%s239 + $0x3d0] sm:$0xff]
        %v411 = vld [vmem:[%s239 + $0x3d8] sm:$0xff]
        %v412 = vld [vmem:[%s239 + $0x3e0] sm:$0xff]
        %v413 = vld [vmem:[%s239 + $0x3e8] sm:$0xff]
        %v414 = vld [vmem:[%s239 + $0x3f0] sm:$0xff]
        %v415 = vld [vmem:[%s239 + $0x3f8] sm:$0xff]
        %v416 = vld [vmem:[%s282] sm:$0xff]
        %v417 = vld [vmem:[%s282 + $0x8] sm:$0xff]
        %v418 = vld [vmem:[%s282 + $0x10] sm:$0xff]
        %v419 = vld [vmem:[%s282 + $0x18] sm:$0xff]
        %v420 = vld [vmem:[%s282 + $0x20] sm:$0xff]
        %v421 = vld [vmem:[%s282 + $0x28] sm:$0xff]
        %v422 = vld [vmem:[%s282 + $0x30] sm:$0xff]
        %v423 = vld [vmem:[%s282 + $0x38] sm:$0xff]
        %v424 = vld [vmem:[%s282 + $0x40] sm:$0xff]
        %v425 = vld [vmem:[%s282 + $0x48] sm:$0xff]
        %v426 = vld [vmem:[%s282 + $0x50] sm:$0xff]
        %v427 = vld [vmem:[%s282 + $0x58] sm:$0xff]
        %v428 = vld [vmem:[%s282 + $0x60] sm:$0xff]
        %v429 = vld [vmem:[%s282 + $0x68] sm:$0xff]
        %v430 = vld [vmem:[%s282 + $0x70] sm:$0xff]
        %v431 = vld [vmem:[%s282 + $0x78] sm:$0xff]
        %v432 = vld [vmem:[%s282 + $0x80] sm:$0xff]
        %v433 = vld [vmem:[%s282 + $0x88] sm:$0xff]
        %v434 = vld [vmem:[%s282 + $0x90] sm:$0xff]
        %v435 = vld [vmem:[%s282 + $0x98] sm:$0xff]
        %v436 = vld [vmem:[%s282 + $0xa0] sm:$0xff]
        %v437 = vld [vmem:[%s282 + $0xa8] sm:$0xff]
        %v438 = vld [vmem:[%s282 + $0xb0] sm:$0xff]
        %v439 = vld [vmem:[%s282 + $0xb8] sm:$0xff]
        %v440 = vld [vmem:[%s282 + $0xc0] sm:$0xff]
        %v441 = vld [vmem:[%s282 + $0xc8] sm:$0xff]
        %v442 = vld [vmem:[%s282 + $0xd0] sm:$0xff]
        %v443 = vld [vmem:[%s282 + $0xd8] sm:$0xff]
        %v444 = vld [vmem:[%s282 + $0xe0] sm:$0xff]
        %v445 = vld [vmem:[%s282 + $0xe8] sm:$0xff]
        %v446 = vld [vmem:[%s282 + $0xf0] sm:$0xff]
        %v447 = vld [vmem:[%s282 + $0xf8] sm:$0xff]
        %v448 = vld [vmem:[%s282 + $0x100] sm:$0xff]
        %v449 = vld [vmem:[%s282 + $0x108] sm:$0xff]
        %v450 = vld [vmem:[%s282 + $0x110] sm:$0xff]
        %v451 = vld [vmem:[%s282 + $0x118] sm:$0xff]
        %v452 = vld [vmem:[%s282 + $0x120] sm:$0xff]
        %v453 = vld [vmem:[%s282 + $0x128] sm:$0xff]
        %v454 = vld [vmem:[%s282 + $0x130] sm:$0xff]
        %v455 = vld [vmem:[%s282 + $0x138] sm:$0xff]
        %v456 = vld [vmem:[%s282 + $0x140] sm:$0xff]
        %v457 = vld [vmem:[%s282 + $0x148] sm:$0xff]
        %v458 = vld [vmem:[%s282 + $0x150] sm:$0xff]
        %v459 = vld [vmem:[%s282 + $0x158] sm:$0xff]
        %v460 = vld [vmem:[%s282 + $0x160] sm:$0xff]
        %v461 = vld [vmem:[%s282 + $0x168] sm:$0xff]
        %v462 = vld [vmem:[%s282 + $0x170] sm:$0xff]
        %v463 = vld [vmem:[%s282 + $0x178] sm:$0xff]
        %v464 = vld [vmem:[%s282 + $0x180] sm:$0xff]
        %v465 = vld [vmem:[%s282 + $0x188] sm:$0xff]
        %v466 = vld [vmem:[%s282 + $0x190] sm:$0xff]
        %v467 = vld [vmem:[%s282 + $0x198] sm:$0xff]
        %v468 = vld [vmem:[%s282 + $0x1a0] sm:$0xff]
        %v469 = vld [vmem:[%s282 + $0x1a8] sm:$0xff]
        %v470 = vld [vmem:[%s282 + $0x1b0] sm:$0xff]
        %v471 = vld [vmem:[%s282 + $0x1b8] sm:$0xff]
        %v472 = vld [vmem:[%s282 + $0x1c0] sm:$0xff]
        %v473 = vld [vmem:[%s282 + $0x1c8] sm:$0xff]
        %v474 = vld [vmem:[%s282 + $0x1d0] sm:$0xff]
        %v475 = vld [vmem:[%s282 + $0x1d8] sm:$0xff]
        %v476 = vld [vmem:[%s282 + $0x1e0] sm:$0xff]
        %v477 = vld [vmem:[%s282 + $0x1e8] sm:$0xff]
        %v478 = vld [vmem:[%s282 + $0x1f0] sm:$0xff]
        %v479 = vld [vmem:[%s282 + $0x1f8] sm:$0xff]
        %481 = vset.pattern.permute.xlu0 0
        %482 = vperm.xlu0 %481, %v416
        %v483 = vpop.permute.xlu0 %482
        %486 = vset.pattern.permute.xlu0 0
        %487 = vperm.xlu0 %486, %v417
        %v488 = vpop.permute.xlu0 %487
        %491 = vset.pattern.permute.xlu0 0
        %492 = vperm.xlu0 %491, %v418
        %v493 = vpop.permute.xlu0 %492
        %496 = vset.pattern.permute.xlu0 0
        %497 = vperm.xlu0 %496, %v419
        %v498 = vpop.permute.xlu0 %497
        %501 = vset.pattern.permute.xlu0 0
        %502 = vperm.xlu0 %501, %v420
        %v503 = vpop.permute.xlu0 %502
        %506 = vset.pattern.permute.xlu0 0
        %507 = vperm.xlu0 %506, %v421
        %v508 = vpop.permute.xlu0 %507
        %511 = vset.pattern.permute.xlu0 0
        %512 = vperm.xlu0 %511, %v422
        %v513 = vpop.permute.xlu0 %512
        %516 = vset.pattern.permute.xlu0 0
        %517 = vperm.xlu0 %516, %v423
        %v518 = vpop.permute.xlu0 %517
        %521 = vset.pattern.permute.xlu0 0
        %522 = vperm.xlu0 %521, %v424
        %v523 = vpop.permute.xlu0 %522
        %526 = vset.pattern.permute.xlu0 0
        %527 = vperm.xlu0 %526, %v425
        %v528 = vpop.permute.xlu0 %527
        %531 = vset.pattern.permute.xlu0 0
        %532 = vperm.xlu0 %531, %v426
        %v533 = vpop.permute.xlu0 %532
        %536 = vset.pattern.permute.xlu0 0
        %537 = vperm.xlu0 %536, %v427
        %v538 = vpop.permute.xlu0 %537
        %541 = vset.pattern.permute.xlu0 0
        %542 = vperm.xlu0 %541, %v428
        %v543 = vpop.permute.xlu0 %542
        %546 = vset.pattern.permute.xlu0 0
        %547 = vperm.xlu0 %546, %v429
        %v548 = vpop.permute.xlu0 %547
        %551 = vset.pattern.permute.xlu0 0
        %552 = vperm.xlu0 %551, %v430
        %v553 = vpop.permute.xlu0 %552
        %556 = vset.pattern.permute.xlu0 0
        %557 = vperm.xlu0 %556, %v431
        %v558 = vpop.permute.xlu0 %557
        %561 = vset.pattern.permute.xlu0 0
        %562 = vperm.xlu0 %561, %v432
        %v563 = vpop.permute.xlu0 %562
        %566 = vset.pattern.permute.xlu0 0
        %567 = vperm.xlu0 %566, %v433
        %v568 = vpop.permute.xlu0 %567
        %571 = vset.pattern.permute.xlu0 0
        %572 = vperm.xlu0 %571, %v434
        %v573 = vpop.permute.xlu0 %572
        %576 = vset.pattern.permute.xlu0 0
        %577 = vperm.xlu0 %576, %v435
        %v578 = vpop.permute.xlu0 %577
        %581 = vset.pattern.permute.xlu0 0
        %582 = vperm.xlu0 %581, %v436
        %v583 = vpop.permute.xlu0 %582
        %586 = vset.pattern.permute.xlu0 0
        %587 = vperm.xlu0 %586, %v437
        %v588 = vpop.permute.xlu0 %587
        %591 = vset.pattern.permute.xlu0 0
        %592 = vperm.xlu0 %591, %v438
        %v593 = vpop.permute.xlu0 %592
        %596 = vset.pattern.permute.xlu0 0
        %597 = vperm.xlu0 %596, %v439
        %v598 = vpop.permute.xlu0 %597
        %601 = vset.pattern.permute.xlu0 0
        %602 = vperm.xlu0 %601, %v440
        %v603 = vpop.permute.xlu0 %602
        %606 = vset.pattern.permute.xlu0 0
        %607 = vperm.xlu0 %606, %v441
        %v608 = vpop.permute.xlu0 %607
        %611 = vset.pattern.permute.xlu0 0
        %612 = vperm.xlu0 %611, %v442
        %v613 = vpop.permute.xlu0 %612
        %616 = vset.pattern.permute.xlu0 0
        %617 = vperm.xlu0 %616, %v443
        %v618 = vpop.permute.xlu0 %617
        %621 = vset.pattern.permute.xlu0 0
        %622 = vperm.xlu0 %621, %v444
        %v623 = vpop.permute.xlu0 %622
        %626 = vset.pattern.permute.xlu0 0
        %627 = vperm.xlu0 %626, %v445
        %v628 = vpop.permute.xlu0 %627
        %631 = vset.pattern.permute.xlu0 0
        %632 = vperm.xlu0 %631, %v446
        %v633 = vpop.permute.xlu0 %632
        %636 = vset.pattern.permute.xlu0 0
        %637 = vperm.xlu0 %636, %v447
        %v638 = vpop.permute.xlu0 %637
        %641 = vset.pattern.permute.xlu0 0
        %642 = vperm.xlu0 %641, %v448
        %v643 = vpop.permute.xlu0 %642
        %646 = vset.pattern.permute.xlu0 0
        %647 = vperm.xlu0 %646, %v449
        %v648 = vpop.permute.xlu0 %647
        %651 = vset.pattern.permute.xlu0 0
        %652 = vperm.xlu0 %651, %v450
        %v653 = vpop.permute.xlu0 %652
        %656 = vset.pattern.permute.xlu0 0
        %657 = vperm.xlu0 %656, %v451
        %v658 = vpop.permute.xlu0 %657
        %661 = vset.pattern.permute.xlu0 0
        %662 = vperm.xlu0 %661, %v452
        %v663 = vpop.permute.xlu0 %662
        %666 = vset.pattern.permute.xlu0 0
        %667 = vperm.xlu0 %666, %v453
        %v668 = vpop.permute.xlu0 %667
        %671 = vset.pattern.permute.xlu0 0
        %672 = vperm.xlu0 %671, %v454
        %v673 = vpop.permute.xlu0 %672
        %676 = vset.pattern.permute.xlu0 0
        %677 = vperm.xlu0 %676, %v455
        %v678 = vpop.permute.xlu0 %677
        %681 = vset.pattern.permute.xlu0 0
        %682 = vperm.xlu0 %681, %v456
        %v683 = vpop.permute.xlu0 %682
        %686 = vset.pattern.permute.xlu0 0
        %687 = vperm.xlu0 %686, %v457
        %v688 = vpop.permute.xlu0 %687
        %691 = vset.pattern.permute.xlu0 0
        %692 = vperm.xlu0 %691, %v458
        %v693 = vpop.permute.xlu0 %692
        %696 = vset.pattern.permute.xlu0 0
        %697 = vperm.xlu0 %696, %v459
        %v698 = vpop.permute.xlu0 %697
        %701 = vset.pattern.permute.xlu0 0
        %702 = vperm.xlu0 %701, %v460
        %v703 = vpop.permute.xlu0 %702
        %706 = vset.pattern.permute.xlu0 0
        %707 = vperm.xlu0 %706, %v461
        %v708 = vpop.permute.xlu0 %707
        %711 = vset.pattern.permute.xlu0 0
        %712 = vperm.xlu0 %711, %v462
        %v713 = vpop.permute.xlu0 %712
        %716 = vset.pattern.permute.xlu0 0
        %717 = vperm.xlu0 %716, %v463
        %v718 = vpop.permute.xlu0 %717
        %721 = vset.pattern.permute.xlu0 0
        %722 = vperm.xlu0 %721, %v464
        %v723 = vpop.permute.xlu0 %722
        %726 = vset.pattern.permute.xlu0 0
        %727 = vperm.xlu0 %726, %v465
        %v728 = vpop.permute.xlu0 %727
        %731 = vset.pattern.permute.xlu0 0
        %732 = vperm.xlu0 %731, %v466
        %v733 = vpop.permute.xlu0 %732
        %736 = vset.pattern.permute.xlu0 0
        %737 = vperm.xlu0 %736, %v467
        %v738 = vpop.permute.xlu0 %737
        %741 = vset.pattern.permute.xlu0 0
        %742 = vperm.xlu0 %741, %v468
        %v743 = vpop.permute.xlu0 %742
        %746 = vset.pattern.permute.xlu0 0
        %747 = vperm.xlu0 %746, %v469
        %v748 = vpop.permute.xlu0 %747
        %751 = vset.pattern.permute.xlu0 0
        %752 = vperm.xlu0 %751, %v470
        %v753 = vpop.permute.xlu0 %752
        %756 = vset.pattern.permute.xlu0 0
        %757 = vperm.xlu0 %756, %v471
        %v758 = vpop.permute.xlu0 %757
        %761 = vset.pattern.permute.xlu0 0
        %762 = vperm.xlu0 %761, %v472
        %v763 = vpop.permute.xlu0 %762
        %766 = vset.pattern.permute.xlu0 0
        %767 = vperm.xlu0 %766, %v473
        %v768 = vpop.permute.xlu0 %767
        %771 = vset.pattern.permute.xlu0 0
        %772 = vperm.xlu0 %771, %v474
        %v773 = vpop.permute.xlu0 %772
        %776 = vset.pattern.permute.xlu0 0
        %777 = vperm.xlu0 %776, %v475
        %v778 = vpop.permute.xlu0 %777
        %781 = vset.pattern.permute.xlu0 0
        %782 = vperm.xlu0 %781, %v476
        %v783 = vpop.permute.xlu0 %782
        %786 = vset.pattern.permute.xlu0 0
        %787 = vperm.xlu0 %786, %v477
        %v788 = vpop.permute.xlu0 %787
        %791 = vset.pattern.permute.xlu0 0
        %792 = vperm.xlu0 %791, %v478
        %v793 = vpop.permute.xlu0 %792
        %796 = vset.pattern.permute.xlu0 0
        %797 = vperm.xlu0 %796, %v479
        %v798 = vpop.permute.xlu0 %797
        %v800 = vmul.f32 %v288, %v483
        %v801 = vmul.f32 %v289, %v483
        %v802 = vmul.f32 %v290, %v488
        %v803 = vmul.f32 %v291, %v488
        %v804 = vmul.f32 %v292, %v493
        %v805 = vmul.f32 %v293, %v493
        %v806 = vmul.f32 %v294, %v498
        %v807 = vmul.f32 %v295, %v498
        %v808 = vmul.f32 %v296, %v503
        %v809 = vmul.f32 %v297, %v503
        %v810 = vmul.f32 %v298, %v508
        %v811 = vmul.f32 %v299, %v508
        %v812 = vmul.f32 %v300, %v513
        %v813 = vmul.f32 %v301, %v513
        %v814 = vmul.f32 %v302, %v518
        %v815 = vmul.f32 %v303, %v518
        %v816 = vmul.f32 %v304, %v523
        %v817 = vmul.f32 %v305, %v523
        %v818 = vmul.f32 %v306, %v528
        %v819 = vmul.f32 %v307, %v528
        %v820 = vmul.f32 %v308, %v533
        %v821 = vmul.f32 %v309, %v533
        %v822 = vmul.f32 %v310, %v538
        %v823 = vmul.f32 %v311, %v538
        %v824 = vmul.f32 %v312, %v543
        %v825 = vmul.f32 %v313, %v543
        %v826 = vmul.f32 %v314, %v548
        %v827 = vmul.f32 %v315, %v548
        %v828 = vmul.f32 %v316, %v553
        %v829 = vmul.f32 %v317, %v553
        %v830 = vmul.f32 %v318, %v558
        %v831 = vmul.f32 %v319, %v558
        %v832 = vmul.f32 %v320, %v563
        %v833 = vmul.f32 %v321, %v563
        %v834 = vmul.f32 %v322, %v568
        %v835 = vmul.f32 %v323, %v568
        %v836 = vmul.f32 %v324, %v573
        %v837 = vmul.f32 %v325, %v573
        %v838 = vmul.f32 %v326, %v578
        %v839 = vmul.f32 %v327, %v578
        %v840 = vmul.f32 %v328, %v583
        %v841 = vmul.f32 %v329, %v583
        %v842 = vmul.f32 %v330, %v588
        %v843 = vmul.f32 %v331, %v588
        %v844 = vmul.f32 %v332, %v593
        %v845 = vmul.f32 %v333, %v593
        %v846 = vmul.f32 %v334, %v598
        %v847 = vmul.f32 %v335, %v598
        %v848 = vmul.f32 %v336, %v603
        %v849 = vmul.f32 %v337, %v603
        %v850 = vmul.f32 %v338, %v608
        %v851 = vmul.f32 %v339, %v608
        %v852 = vmul.f32 %v340, %v613
        %v853 = vmul.f32 %v341, %v613
        %v854 = vmul.f32 %v342, %v618
        %v855 = vmul.f32 %v343, %v618
        %v856 = vmul.f32 %v344, %v623
        %v857 = vmul.f32 %v345, %v623
        %v858 = vmul.f32 %v346, %v628
        %v859 = vmul.f32 %v347, %v628
        %v860 = vmul.f32 %v348, %v633
        %v861 = vmul.f32 %v349, %v633
        %v862 = vmul.f32 %v350, %v638
        %v863 = vmul.f32 %v351, %v638
        %v864 = vmul.f32 %v352, %v643
        %v865 = vmul.f32 %v353, %v643
        %v866 = vmul.f32 %v354, %v648
        %v867 = vmul.f32 %v355, %v648
        %v868 = vmul.f32 %v356, %v653
        %v869 = vmul.f32 %v357, %v653
        %v870 = vmul.f32 %v358, %v658
        %v871 = vmul.f32 %v359, %v658
        %v872 = vmul.f32 %v360, %v663
        %v873 = vmul.f32 %v361, %v663
        %v874 = vmul.f32 %v362, %v668
        %v875 = vmul.f32 %v363, %v668
        %v876 = vmul.f32 %v364, %v673
        %v877 = vmul.f32 %v365, %v673
        %v878 = vmul.f32 %v366, %v678
        %v879 = vmul.f32 %v367, %v678
        %v880 = vmul.f32 %v368, %v683
        %v881 = vmul.f32 %v369, %v683
        %v882 = vmul.f32 %v370, %v688
        %v883 = vmul.f32 %v371, %v688
        %v884 = vmul.f32 %v372, %v693
        %v885 = vmul.f32 %v373, %v693
        %v886 = vmul.f32 %v374, %v698
        %v887 = vmul.f32 %v375, %v698
        %v888 = vmul.f32 %v376, %v703
        %v889 = vmul.f32 %v377, %v703
        %v890 = vmul.f32 %v378, %v708
        %v891 = vmul.f32 %v379, %v708
        %v892 = vmul.f32 %v380, %v713
        %v893 = vmul.f32 %v381, %v713
        %v894 = vmul.f32 %v382, %v718
        %v895 = vmul.f32 %v383, %v718
        %v896 = vmul.f32 %v384, %v723
        %v897 = vmul.f32 %v385, %v723
        %v898 = vmul.f32 %v386, %v728
        %v899 = vmul.f32 %v387, %v728
        %v900 = vmul.f32 %v388, %v733
        %v901 = vmul.f32 %v389, %v733
        %v902 = vmul.f32 %v390, %v738
        %v903 = vmul.f32 %v391, %v738
        %v904 = vmul.f32 %v392, %v743
        %v905 = vmul.f32 %v393, %v743
        %v906 = vmul.f32 %v394, %v748
        %v907 = vmul.f32 %v395, %v748
        %v908 = vmul.f32 %v396, %v753
        %v909 = vmul.f32 %v397, %v753
        %v910 = vmul.f32 %v398, %v758
        %v911 = vmul.f32 %v399, %v758
        %v912 = vmul.f32 %v400, %v763
        %v913 = vmul.f32 %v401, %v763
        %v914 = vmul.f32 %v402, %v768
        %v915 = vmul.f32 %v403, %v768
        %v916 = vmul.f32 %v404, %v773
        %v917 = vmul.f32 %v405, %v773
        %v918 = vmul.f32 %v406, %v778
        %v919 = vmul.f32 %v407, %v778
        %v920 = vmul.f32 %v408, %v783
        %v921 = vmul.f32 %v409, %v783
        %v922 = vmul.f32 %v410, %v788
        %v923 = vmul.f32 %v411, %v788
        %v924 = vmul.f32 %v412, %v793
        %v925 = vmul.f32 %v413, %v793
        %v926 = vmul.f32 %v414, %v798
        %v927 = vmul.f32 %v415, %v798
        %v928 = vadd.f32 %v800, %v802
        %v929 = vadd.f32 %v928, %v804
        %v930 = vadd.f32 %v929, %v806
        %v931 = vadd.f32 %v930, %v808
        %v932 = vadd.f32 %v931, %v810
        %v933 = vadd.f32 %v932, %v812
        %v934 = vadd.f32 %v933, %v814
        %v935 = vrot.slane %v934, 4
        %v936 = vadd.f32 %v934, %v935
        %v937 = vrot.slane %v936, 2
        %v938 = vadd.f32 %v936, %v937
        %v939 = vrot.slane %v938, 1
        %v940 = vadd.f32 %v938, %v939
        %v941 = vadd.f32 %v801, %v803
        %v942 = vadd.f32 %v941, %v805
        %v943 = vadd.f32 %v942, %v807
        %v944 = vadd.f32 %v943, %v809
        %v945 = vadd.f32 %v944, %v811
        %v946 = vadd.f32 %v945, %v813
        %v947 = vadd.f32 %v946, %v815
        %v948 = vrot.slane %v947, 4
        %v949 = vadd.f32 %v947, %v948
        %v950 = vrot.slane %v949, 2
        %v951 = vadd.f32 %v949, %v950
        %v952 = vrot.slane %v951, 1
        %v953 = vadd.f32 %v951, %v952
        %v954 = vadd.f32 %v816, %v818
        %v955 = vadd.f32 %v954, %v820
        %v956 = vadd.f32 %v955, %v822
        %v957 = vadd.f32 %v956, %v824
        %v958 = vadd.f32 %v957, %v826
        %v959 = vadd.f32 %v958, %v828
        %v960 = vadd.f32 %v959, %v830
        %v961 = vrot.slane %v960, 4
        %v962 = vadd.f32 %v960, %v961
        %v963 = vrot.slane %v962, 2
        %v964 = vadd.f32 %v962, %v963
        %v965 = vrot.slane %v964, 1
        %v966 = vadd.f32 %v964, %v965
        %v967 = vadd.f32 %v817, %v819
        %v968 = vadd.f32 %v967, %v821
        %v969 = vadd.f32 %v968, %v823
        %v970 = vadd.f32 %v969, %v825
        %v971 = vadd.f32 %v970, %v827
        %v972 = vadd.f32 %v971, %v829
        %v973 = vadd.f32 %v972, %v831
        %v974 = vrot.slane %v973, 4
        %v975 = vadd.f32 %v973, %v974
        %v976 = vrot.slane %v975, 2
        %v977 = vadd.f32 %v975, %v976
        %v978 = vrot.slane %v977, 1
        %v979 = vadd.f32 %v977, %v978
        %v980 = vadd.f32 %v832, %v834
        %v981 = vadd.f32 %v980, %v836
        %v982 = vadd.f32 %v981, %v838
        %v983 = vadd.f32 %v982, %v840
        %v984 = vadd.f32 %v983, %v842
        %v985 = vadd.f32 %v984, %v844
        %v986 = vadd.f32 %v985, %v846
        %v987 = vrot.slane %v986, 4
        %v988 = vadd.f32 %v986, %v987
        %v989 = vrot.slane %v988, 2
        %v990 = vadd.f32 %v988, %v989
        %v991 = vrot.slane %v990, 1
        %v992 = vadd.f32 %v990, %v991
        %v993 = vadd.f32 %v833, %v835
        %v994 = vadd.f32 %v993, %v837
        %v995 = vadd.f32 %v994, %v839
        %v996 = vadd.f32 %v995, %v841
        %v997 = vadd.f32 %v996, %v843
        %v998 = vadd.f32 %v997, %v845
        %v999 = vadd.f32 %v998, %v847
        %v1000 = vrot.slane %v999, 4
        %v1001 = vadd.f32 %v999, %v1000
        %v1002 = vrot.slane %v1001, 2
        %v1003 = vadd.f32 %v1001, %v1002
        %v1004 = vrot.slane %v1003, 1
        %v1005 = vadd.f32 %v1003, %v1004
        %v1006 = vadd.f32 %v848, %v850
        %v1007 = vadd.f32 %v1006, %v852
        %v1008 = vadd.f32 %v1007, %v854
        %v1009 = vadd.f32 %v1008, %v856
        %v1010 = vadd.f32 %v1009, %v858
        %v1011 = vadd.f32 %v1010, %v860
        %v1012 = vadd.f32 %v1011, %v862
        %v1013 = vrot.slane %v1012, 4
        %v1014 = vadd.f32 %v1012, %v1013
        %v1015 = vrot.slane %v1014, 2
        %v1016 = vadd.f32 %v1014, %v1015
        %v1017 = vrot.slane %v1016, 1
        %v1018 = vadd.f32 %v1016, %v1017
        %v1019 = vadd.f32 %v849, %v851
        %v1020 = vadd.f32 %v1019, %v853
        %v1021 = vadd.f32 %v1020, %v855
        %v1022 = vadd.f32 %v1021, %v857
        %v1023 = vadd.f32 %v1022, %v859
        %v1024 = vadd.f32 %v1023, %v861
        %v1025 = vadd.f32 %v1024, %v863
        %v1026 = vrot.slane %v1025, 4
        %v1027 = vadd.f32 %v1025, %v1026
        %v1028 = vrot.slane %v1027, 2
        %v1029 = vadd.f32 %v1027, %v1028
        %v1030 = vrot.slane %v1029, 1
        %v1031 = vadd.f32 %v1029, %v1030
        %v1032 = vadd.f32 %v864, %v866
        %v1033 = vadd.f32 %v1032, %v868
        %v1034 = vadd.f32 %v1033, %v870
        %v1035 = vadd.f32 %v1034, %v872
        %v1036 = vadd.f32 %v1035, %v874
        %v1037 = vadd.f32 %v1036, %v876
        %v1038 = vadd.f32 %v1037, %v878
        %v1039 = vrot.slane %v1038, 4
        %v1040 = vadd.f32 %v1038, %v1039
        %v1041 = vrot.slane %v1040, 2
        %v1042 = vadd.f32 %v1040, %v1041
        %v1043 = vrot.slane %v1042, 1
        %v1044 = vadd.f32 %v1042, %v1043
        %v1045 = vadd.f32 %v865, %v867
        %v1046 = vadd.f32 %v1045, %v869
        %v1047 = vadd.f32 %v1046, %v871
        %v1048 = vadd.f32 %v1047, %v873
        %v1049 = vadd.f32 %v1048, %v875
        %v1050 = vadd.f32 %v1049, %v877
        %v1051 = vadd.f32 %v1050, %v879
        %v1052 = vrot.slane %v1051, 4
        %v1053 = vadd.f32 %v1051, %v1052
        %v1054 = vrot.slane %v1053, 2
        %v1055 = vadd.f32 %v1053, %v1054
        %v1056 = vrot.slane %v1055, 1
        %v1057 = vadd.f32 %v1055, %v1056
        %v1058 = vadd.f32 %v880, %v882
        %v1059 = vadd.f32 %v1058, %v884
        %v1060 = vadd.f32 %v1059, %v886
        %v1061 = vadd.f32 %v1060, %v888
        %v1062 = vadd.f32 %v1061, %v890
        %v1063 = vadd.f32 %v1062, %v892
        %v1064 = vadd.f32 %v1063, %v894
        %v1065 = vrot.slane %v1064, 4
        %v1066 = vadd.f32 %v1064, %v1065
        %v1067 = vrot.slane %v1066, 2
        %v1068 = vadd.f32 %v1066, %v1067
        %v1069 = vrot.slane %v1068, 1
        %v1070 = vadd.f32 %v1068, %v1069
        %v1071 = vadd.f32 %v881, %v883
        %v1072 = vadd.f32 %v1071, %v885
        %v1073 = vadd.f32 %v1072, %v887
        %v1074 = vadd.f32 %v1073, %v889
        %v1075 = vadd.f32 %v1074, %v891
        %v1076 = vadd.f32 %v1075, %v893
        %v1077 = vadd.f32 %v1076, %v895
        %v1078 = vrot.slane %v1077, 4
        %v1079 = vadd.f32 %v1077, %v1078
        %v1080 = vrot.slane %v1079, 2
        %v1081 = vadd.f32 %v1079, %v1080
        %v1082 = vrot.slane %v1081, 1
        %v1083 = vadd.f32 %v1081, %v1082
        %v1084 = vadd.f32 %v896, %v898
        %v1085 = vadd.f32 %v1084, %v900
        %v1086 = vadd.f32 %v1085, %v902
        %v1087 = vadd.f32 %v1086, %v904
        %v1088 = vadd.f32 %v1087, %v906
        %v1089 = vadd.f32 %v1088, %v908
        %v1090 = vadd.f32 %v1089, %v910
        %v1091 = vrot.slane %v1090, 4
        %v1092 = vadd.f32 %v1090, %v1091
        %v1093 = vrot.slane %v1092, 2
        %v1094 = vadd.f32 %v1092, %v1093
        %v1095 = vrot.slane %v1094, 1
        %v1096 = vadd.f32 %v1094, %v1095
        %v1097 = vadd.f32 %v897, %v899
        %v1098 = vadd.f32 %v1097, %v901
        %v1099 = vadd.f32 %v1098, %v903
        %v1100 = vadd.f32 %v1099, %v905
        %v1101 = vadd.f32 %v1100, %v907
        %v1102 = vadd.f32 %v1101, %v909
        %v1103 = vadd.f32 %v1102, %v911
        %v1104 = vrot.slane %v1103, 4
        %v1105 = vadd.f32 %v1103, %v1104
        %v1106 = vrot.slane %v1105, 2
        %v1107 = vadd.f32 %v1105, %v1106
        %v1108 = vrot.slane %v1107, 1
        %v1109 = vadd.f32 %v1107, %v1108
        %v1110 = vadd.f32 %v912, %v914
        %v1111 = vadd.f32 %v1110, %v916
        %v1112 = vadd.f32 %v1111, %v918
        %v1113 = vadd.f32 %v1112, %v920
        %v1114 = vadd.f32 %v1113, %v922
        %v1115 = vadd.f32 %v1114, %v924
        %v1116 = vadd.f32 %v1115, %v926
        %v1117 = vrot.slane %v1116, 4
        %v1118 = vadd.f32 %v1116, %v1117
        %v1119 = vrot.slane %v1118, 2
        %v1120 = vadd.f32 %v1118, %v1119
        %v1121 = vrot.slane %v1120, 1
        %v1122 = vadd.f32 %v1120, %v1121
        %v1123 = vadd.f32 %v913, %v915
        %v1124 = vadd.f32 %v1123, %v917
        %v1125 = vadd.f32 %v1124, %v919
        %v1126 = vadd.f32 %v1125, %v921
        %v1127 = vadd.f32 %v1126, %v923
        %v1128 = vadd.f32 %v1127, %v925
        %v1129 = vadd.f32 %v1128, %v927
        %v1130 = vrot.slane %v1129, 4
        %v1131 = vadd.f32 %v1129, %v1130
        %v1132 = vrot.slane %v1131, 2
        %v1133 = vadd.f32 %v1131, %v1132
        %v1134 = vrot.slane %v1133, 1
        %v1135 = vadd.f32 %v1133, %v1134
        %vm1136 = vcmask 7168
        %v1137 = vsel %vm1136, %v416, 0.0
        %v1138 = vsel %vm1136, %v417, 0.0
        %v1139 = vadd.f32 %v1137, %v1138
        %v1140 = vsel %vm1136, %v418, 0.0
        %v1141 = vadd.f32 %v1139, %v1140
        %v1142 = vsel %vm1136, %v419, 0.0
        %v1143 = vadd.f32 %v1141, %v1142
        %v1144 = vsel %vm1136, %v420, 0.0
        %v1145 = vadd.f32 %v1143, %v1144
        %v1146 = vsel %vm1136, %v421, 0.0
        %v1147 = vadd.f32 %v1145, %v1146
        %v1148 = vsel %vm1136, %v422, 0.0
        %v1149 = vadd.f32 %v1147, %v1148
        %v1150 = vsel %vm1136, %v423, 0.0
        %v1151 = vadd.f32 %v1149, %v1150
        %v1152 = vrot.slane %v1151, 4
        %v1153 = vadd.f32 %v1151, %v1152
        %v1154 = vrot.slane %v1153, 2
        %v1155 = vadd.f32 %v1153, %v1154
        %v1156 = vrot.slane %v1155, 1
        %v1157 = vadd.f32 %v1155, %v1156
        %v1158 = vsel %vm1136, %v424, 0.0
        %v1159 = vsel %vm1136, %v425, 0.0
        %v1160 = vadd.f32 %v1158, %v1159
        %v1161 = vsel %vm1136, %v426, 0.0
        %v1162 = vadd.f32 %v1160, %v1161
        %v1163 = vsel %vm1136, %v427, 0.0
        %v1164 = vadd.f32 %v1162, %v1163
        %v1165 = vsel %vm1136, %v428, 0.0
        %v1166 = vadd.f32 %v1164, %v1165
        %v1167 = vsel %vm1136, %v429, 0.0
        %v1168 = vadd.f32 %v1166, %v1167
        %v1169 = vsel %vm1136, %v430, 0.0
        %v1170 = vadd.f32 %v1168, %v1169
        %v1171 = vsel %vm1136, %v431, 0.0
        %v1172 = vadd.f32 %v1170, %v1171
        %v1173 = vrot.slane %v1172, 4
        %v1174 = vadd.f32 %v1172, %v1173
        %v1175 = vrot.slane %v1174, 2
        %v1176 = vadd.f32 %v1174, %v1175
        %v1177 = vrot.slane %v1176, 1
        %v1178 = vadd.f32 %v1176, %v1177
        %v1179 = vsel %vm1136, %v432, 0.0
        %v1180 = vsel %vm1136, %v433, 0.0
        %v1181 = vadd.f32 %v1179, %v1180
        %v1182 = vsel %vm1136, %v434, 0.0
        %v1183 = vadd.f32 %v1181, %v1182
        %v1184 = vsel %vm1136, %v435, 0.0
        %v1185 = vadd.f32 %v1183, %v1184
        %v1186 = vsel %vm1136, %v436, 0.0
        %v1187 = vadd.f32 %v1185, %v1186
        %v1188 = vsel %vm1136, %v437, 0.0
        %v1189 = vadd.f32 %v1187, %v1188
        %v1190 = vsel %vm1136, %v438, 0.0
        %v1191 = vadd.f32 %v1189, %v1190
        %v1192 = vsel %vm1136, %v439, 0.0
        %v1193 = vadd.f32 %v1191, %v1192
        %v1194 = vrot.slane %v1193, 4
        %v1195 = vadd.f32 %v1193, %v1194
        %v1196 = vrot.slane %v1195, 2
        %v1197 = vadd.f32 %v1195, %v1196
        %v1198 = vrot.slane %v1197, 1
        %v1199 = vadd.f32 %v1197, %v1198
        %v1200 = vsel %vm1136, %v440, 0.0
        %v1201 = vsel %vm1136, %v441, 0.0
        %v1202 = vadd.f32 %v1200, %v1201
        %v1203 = vsel %vm1136, %v442, 0.0
        %v1204 = vadd.f32 %v1202, %v1203
        %v1205 = vsel %vm1136, %v443, 0.0
        %v1206 = vadd.f32 %v1204, %v1205
        %v1207 = vsel %vm1136, %v444, 0.0
        %v1208 = vadd.f32 %v1206, %v1207
        %v1209 = vsel %vm1136, %v445, 0.0
        %v1210 = vadd.f32 %v1208, %v1209
        %v1211 = vsel %vm1136, %v446, 0.0
        %v1212 = vadd.f32 %v1210, %v1211
        %v1213 = vsel %vm1136, %v447, 0.0
        %v1214 = vadd.f32 %v1212, %v1213
        %v1215 = vrot.slane %v1214, 4
        %v1216 = vadd.f32 %v1214, %v1215
        %v1217 = vrot.slane %v1216, 2
        %v1218 = vadd.f32 %v1216, %v1217
        %v1219 = vrot.slane %v1218, 1
        %v1220 = vadd.f32 %v1218, %v1219
        %v1221 = vsel %vm1136, %v448, 0.0
        %v1222 = vsel %vm1136, %v449, 0.0
        %v1223 = vadd.f32 %v1221, %v1222
        %v1224 = vsel %vm1136, %v450, 0.0
        %v1225 = vadd.f32 %v1223, %v1224
        %v1226 = vsel %vm1136, %v451, 0.0
        %v1227 = vadd.f32 %v1225, %v1226
        %v1228 = vsel %vm1136, %v452, 0.0
        %v1229 = vadd.f32 %v1227, %v1228
        %v1230 = vsel %vm1136, %v453, 0.0
        %v1231 = vadd.f32 %v1229, %v1230
        %v1232 = vsel %vm1136, %v454, 0.0
        %v1233 = vadd.f32 %v1231, %v1232
        %v1234 = vsel %vm1136, %v455, 0.0
        %v1235 = vadd.f32 %v1233, %v1234
        %v1236 = vrot.slane %v1235, 4
        %v1237 = vadd.f32 %v1235, %v1236
        %v1238 = vrot.slane %v1237, 2
        %v1239 = vadd.f32 %v1237, %v1238
        %v1240 = vrot.slane %v1239, 1
        %v1241 = vadd.f32 %v1239, %v1240
        %v1242 = vsel %vm1136, %v456, 0.0
        %v1243 = vsel %vm1136, %v457, 0.0
        %v1244 = vadd.f32 %v1242, %v1243
        %v1245 = vsel %vm1136, %v458, 0.0
        %v1246 = vadd.f32 %v1244, %v1245
        %v1247 = vsel %vm1136, %v459, 0.0
        %v1248 = vadd.f32 %v1246, %v1247
        %v1249 = vsel %vm1136, %v460, 0.0
        %v1250 = vadd.f32 %v1248, %v1249
        %v1251 = vsel %vm1136, %v461, 0.0
        %v1252 = vadd.f32 %v1250, %v1251
        %v1253 = vsel %vm1136, %v462, 0.0
        %v1254 = vadd.f32 %v1252, %v1253
        %v1255 = vsel %vm1136, %v463, 0.0
        %v1256 = vadd.f32 %v1254, %v1255
        %v1257 = vrot.slane %v1256, 4
        %v1258 = vadd.f32 %v1256, %v1257
        %v1259 = vrot.slane %v1258, 2
        %v1260 = vadd.f32 %v1258, %v1259
        %v1261 = vrot.slane %v1260, 1
        %v1262 = vadd.f32 %v1260, %v1261
        %v1263 = vsel %vm1136, %v464, 0.0
        %v1264 = vsel %vm1136, %v465, 0.0
        %v1265 = vadd.f32 %v1263, %v1264
        %v1266 = vsel %vm1136, %v466, 0.0
        %v1267 = vadd.f32 %v1265, %v1266
        %v1268 = vsel %vm1136, %v467, 0.0
        %v1269 = vadd.f32 %v1267, %v1268
        %v1270 = vsel %vm1136, %v468, 0.0
        %v1271 = vadd.f32 %v1269, %v1270
        %v1272 = vsel %vm1136, %v469, 0.0
        %v1273 = vadd.f32 %v1271, %v1272
        %v1274 = vsel %vm1136, %v470, 0.0
        %v1275 = vadd.f32 %v1273, %v1274
        %v1276 = vsel %vm1136, %v471, 0.0
        %v1277 = vadd.f32 %v1275, %v1276
        %v1278 = vrot.slane %v1277, 4
        %v1279 = vadd.f32 %v1277, %v1278
        %v1280 = vrot.slane %v1279, 2
        %v1281 = vadd.f32 %v1279, %v1280
        %v1282 = vrot.slane %v1281, 1
        %v1283 = vadd.f32 %v1281, %v1282
        %v1284 = vsel %vm1136, %v472, 0.0
        %v1285 = vsel %vm1136, %v473, 0.0
        %v1286 = vadd.f32 %v1284, %v1285
        %v1287 = vsel %vm1136, %v474, 0.0
        %v1288 = vadd.f32 %v1286, %v1287
        %v1289 = vsel %vm1136, %v475, 0.0
        %v1290 = vadd.f32 %v1288, %v1289
        %v1291 = vsel %vm1136, %v476, 0.0
        %v1292 = vadd.f32 %v1290, %v1291
        %v1293 = vsel %vm1136, %v477, 0.0
        %v1294 = vadd.f32 %v1292, %v1293
        %v1295 = vsel %vm1136, %v478, 0.0
        %v1296 = vadd.f32 %v1294, %v1295
        %v1297 = vsel %vm1136, %v479, 0.0
        %v1298 = vadd.f32 %v1296, %v1297
        %v1299 = vrot.slane %v1298, 4
        %v1300 = vadd.f32 %v1298, %v1299
        %v1301 = vrot.slane %v1300, 2
        %v1302 = vadd.f32 %v1300, %v1301
        %v1303 = vrot.slane %v1302, 1
        %v1304 = vadd.f32 %v1302, %v1303
        %v1305 = vmax.f32 %v1157, 1e-09
        %v1306 = vmax.f32 %v1178, 1e-09
        %v1307 = vmax.f32 %v1199, 1e-09
        %v1308 = vmax.f32 %v1220, 1e-09
        %v1309 = vmax.f32 %v1241, 1e-09
        %v1310 = vmax.f32 %v1262, 1e-09
        %v1311 = vmax.f32 %v1283, 1e-09
        %v1312 = vmax.f32 %v1304, 1e-09
        %v1313 = vrcp.pop %v1305
        %v1314 = vrcp.pop %v1306
        %v1315 = vrcp.pop %v1307
        %v1316 = vrcp.pop %v1308
        %v1317 = vrcp.pop %v1309
        %v1318 = vrcp.pop %v1310
        %v1319 = vrcp.pop %v1311
        %v1320 = vrcp.pop %v1312
        %1322 = vset.pattern.permute.xlu0 0
        %1323 = vperm.xlu0 %1322, %v1313
        %v1324 = vpop.permute.xlu0 %1323
        %1327 = vset.pattern.permute.xlu0 0
        %1328 = vperm.xlu0 %1327, %v1314
        %v1329 = vpop.permute.xlu0 %1328
        %1332 = vset.pattern.permute.xlu0 0
        %1333 = vperm.xlu0 %1332, %v1315
        %v1334 = vpop.permute.xlu0 %1333
        %1337 = vset.pattern.permute.xlu0 0
        %1338 = vperm.xlu0 %1337, %v1316
        %v1339 = vpop.permute.xlu0 %1338
        %1342 = vset.pattern.permute.xlu0 0
        %1343 = vperm.xlu0 %1342, %v1317
        %v1344 = vpop.permute.xlu0 %1343
        %1347 = vset.pattern.permute.xlu0 0
        %1348 = vperm.xlu0 %1347, %v1318
        %v1349 = vpop.permute.xlu0 %1348
        %1352 = vset.pattern.permute.xlu0 0
        %1353 = vperm.xlu0 %1352, %v1319
        %v1354 = vpop.permute.xlu0 %1353
        %1357 = vset.pattern.permute.xlu0 0
        %1358 = vperm.xlu0 %1357, %v1320
        %v1359 = vpop.permute.xlu0 %1358
        %v1361 = vmul.f32 %v940, %v1324
        %v1362 = vmul.f32 %v953, %v1324
        %v1363 = vmul.f32 %v966, %v1329
        %v1364 = vmul.f32 %v979, %v1329
        %v1365 = vmul.f32 %v992, %v1334
        %v1366 = vmul.f32 %v1005, %v1334
        %v1367 = vmul.f32 %v1018, %v1339
        %v1368 = vmul.f32 %v1031, %v1339
        %v1369 = vmul.f32 %v1044, %v1344
        %v1370 = vmul.f32 %v1057, %v1344
        %v1371 = vmul.f32 %v1070, %v1349
        %v1372 = vmul.f32 %v1083, %v1349
        %v1373 = vmul.f32 %v1096, %v1354
        %v1374 = vmul.f32 %v1109, %v1354
        %v1375 = vmul.f32 %v1122, %v1359
        %v1376 = vmul.f32 %v1135, %v1359
        %v1377 = vld [vmem:[%s2] sm:$0xff]
        %v1378 = vld [vmem:[%s2 + $0x8] sm:$0xff]
        %v1379 = vld [vmem:[%s2 + $0x10] sm:$0xff]
        %v1380 = vld [vmem:[%s2 + $0x18] sm:$0xff]
        %v1381 = vld [vmem:[%s2 + $0x20] sm:$0xff]
        %v1382 = vld [vmem:[%s2 + $0x28] sm:$0xff]
        %v1383 = vld [vmem:[%s2 + $0x30] sm:$0xff]
        %v1384 = vld [vmem:[%s2 + $0x38] sm:$0xff]
        %v1385 = vld [vmem:[%s2 + $0x40] sm:$0xff]
        %v1386 = vld [vmem:[%s2 + $0x48] sm:$0xff]
        %v1387 = vld [vmem:[%s2 + $0x50] sm:$0xff]
        %v1388 = vld [vmem:[%s2 + $0x58] sm:$0xff]
        %v1389 = vld [vmem:[%s2 + $0x60] sm:$0xff]
        %v1390 = vld [vmem:[%s2 + $0x68] sm:$0xff]
        %v1391 = vld [vmem:[%s2 + $0x70] sm:$0xff]
        %v1392 = vld [vmem:[%s2 + $0x78] sm:$0xff]
        %v1393 = vld [vmem:[%s2 + $0x80] sm:$0xff]
        %v1394 = vld [vmem:[%s2 + $0x88] sm:$0xff]
        %v1395 = vld [vmem:[%s2 + $0x90] sm:$0xff]
        %v1396 = vld [vmem:[%s2 + $0x98] sm:$0xff]
        %v1397 = vld [vmem:[%s2 + $0xa0] sm:$0xff]
        %v1398 = vld [vmem:[%s2 + $0xa8] sm:$0xff]
        %v1399 = vld [vmem:[%s2 + $0xb0] sm:$0xff]
        %v1400 = vld [vmem:[%s2 + $0xb8] sm:$0xff]
        %v1401 = vld [vmem:[%s2 + $0xc0] sm:$0xff]
        %v1402 = vld [vmem:[%s2 + $0xc8] sm:$0xff]
        %v1403 = vld [vmem:[%s2 + $0xd0] sm:$0xff]
        %v1404 = vld [vmem:[%s2 + $0xd8] sm:$0xff]
        %v1405 = vld [vmem:[%s2 + $0xe0] sm:$0xff]
        %v1406 = vld [vmem:[%s2 + $0xe8] sm:$0xff]
        %v1407 = vld [vmem:[%s2 + $0xf0] sm:$0xff]
        %v1408 = vld [vmem:[%s2 + $0xf8] sm:$0xff]
        %v1409 = vld [vmem:[%s3] sm:$0x1]
        %v1411 = vperm.slane %v1409, 0
        %vm1429 = vcmask 1041409
        %v1430 = vsel %vm1429, %v1363, %v1361
        %vm1431 = vcmask 1042434
        %v1432 = vsel %vm1431, %v1365, %v1430
        %vm1433 = vcmask 1043459
        %v1434 = vsel %vm1433, %v1367, %v1432
        %vm1435 = vcmask 1044484
        %v1436 = vsel %vm1435, %v1369, %v1434
        %vm1437 = vcmask 1045509
        %v1438 = vsel %vm1437, %v1371, %v1436
        %vm1439 = vcmask 1046534
        %v1440 = vsel %vm1439, %v1373, %v1438
        %vm1441 = vcmask 1047559
        %v1442 = vsel %vm1441, %v1375, %v1440
        %v1443 = vsel %vm1429, %v1364, %v1362
        %v1444 = vsel %vm1431, %v1366, %v1443
        %v1445 = vsel %vm1433, %v1368, %v1444
        %v1446 = vsel %vm1435, %v1370, %v1445
        %v1447 = vsel %vm1437, %v1372, %v1446
        %v1448 = vsel %vm1439, %v1374, %v1447
        %v1449 = vsel %vm1441, %v1376, %v1448
        %1452 = vmatpush.msra.mxu0 %v1392
        %1453 = vmatpush.msra.mxu0 %v1391
        %1454 = vmatpush.msra.mxu0 %v1390
        %1455 = vmatpush.msra.mxu0 %v1389
        %1456 = vmatpush.msra.mxu0 %v1388
        %1457 = vmatpush.msra.mxu0 %v1387
        %1458 = vmatpush.msra.mxu0 %v1386
        %1459 = vmatpush.msra.mxu0 %v1385
        %1460 = vmatpush.msra.mxu0 %v1384
        %1461 = vmatpush.msra.mxu0 %v1383
        %1462 = vmatpush.msra.mxu0 %v1382
        %1463 = vmatpush.msra.mxu0 %v1381
        %1464 = vmatpush.msra.mxu0 %v1380
        %1465 = vmatpush.msra.mxu0 %v1379
        %1466 = vmatpush.msra.mxu0 %v1378
        %1467 = vmatpush.msra.mxu0 %v1377
        %1468 = vmatmul.f32.gmra.mxu0 %v1442
        %v1469 = vpop.f32.mrf.mxu0
        %v1470 = vadd.f32 %v1411, %v1469
        %1471 = vdwg.mxu0
        %1472 = vmatpush.msra.mxu0 %v1408
        %1473 = vmatpush.msra.mxu0 %v1407
        %1474 = vmatpush.msra.mxu0 %v1406
        %1475 = vmatpush.msra.mxu0 %v1405
        %1476 = vmatpush.msra.mxu0 %v1404
        %1477 = vmatpush.msra.mxu0 %v1403
        %1478 = vmatpush.msra.mxu0 %v1402
        %1479 = vmatpush.msra.mxu0 %v1401
        %1480 = vmatpush.msra.mxu0 %v1400
        %1481 = vmatpush.msra.mxu0 %v1399
        %1482 = vmatpush.msra.mxu0 %v1398
        %1483 = vmatpush.msra.mxu0 %v1397
        %1484 = vmatpush.msra.mxu0 %v1396
        %1485 = vmatpush.msra.mxu0 %v1395
        %1486 = vmatpush.msra.mxu0 %v1394
        %1487 = vmatpush.msra.mxu0 %v1393
        %1488 = vmatmul.f32.gmra.mxu0 %v1449
        %v1489 = vpop.f32.mrf.mxu0
        %v1490 = vadd.f32 %v1470, %v1489
        %1491 = vdwg.mxu0
        %v1492 = vmul.f32 %v1490, %v1490
        %1493 = vadd.xlane.f32.xlu0 %v1492
        %v1494 = vpop.xlane.xlu0 %1493
        %v1495 = vrsqrt.pop %v1494
        %v1496 = vmul.f32 %v1495, %v1494
        %v1497 = vmul.f32 %v1496, %v1495
        %v1498 = vmul.f32 0.5, %v1497
        %v1499 = vsub.f32 1.5, %v1498
        %v1500 = vmul.f32 %v1495, %v1499
        %v1501 = vmul.f32 %v1494, %v1500
        %vm1502 = vcmp.eq.f32.partialorder %v1494, inf
        %v1503 = vsel %vm1502, %v1494, %v1501
        %vm1504 = vcmp.eq.f32.partialorder %v1494, 0.0
        %v1505 = vand.u32 %v1494, 2147483648
        %v1506 = vsel %vm1504, %v1505, %v1503
        %v1507 = vadd.f32 %v1506, 1e-08
        %v1508 = vrcp.pop %v1507
        %v1509 = vmul.f32 %v1490, %v1508
        %v1510 = vld [vmem:[%s287] sm:$0xff]
        %v1511 = vmul.f32 %v1510, %v1510
        %1512 = vadd.xlane.f32.xlu0 %v1511
        %v1513 = vpop.xlane.xlu0 %1512
        %v1514 = vrsqrt.pop %v1513
        %v1515 = vmul.f32 %v1514, %v1513
        %v1516 = vmul.f32 %v1515, %v1514
        %v1517 = vmul.f32 0.5, %v1516
        %v1518 = vsub.f32 1.5, %v1517
        %v1519 = vmul.f32 %v1514, %v1518
        %v1520 = vmul.f32 %v1513, %v1519
        %vm1521 = vcmp.eq.f32.partialorder %v1513, inf
        %v1522 = vsel %vm1521, %v1513, %v1520
        %vm1523 = vcmp.eq.f32.partialorder %v1513, 0.0
        %v1524 = vand.u32 %v1513, 2147483648
        %v1525 = vsel %vm1523, %v1524, %v1522
        %v1526 = vadd.f32 %v1525, 1e-08
        %v1527 = vrcp.pop %v1526
        %v1528 = vmul.f32 %v1510, %v1527
        %v1529 = vsub.f32 %v1509, %v1528
        %v1530 = vmul.f32 %v1529, %v1529
        %v1531 = vrot.slane %v1530, 4
        %v1532 = vadd.f32 %v1530, %v1531
        %v1533 = vrot.slane %v1532, 2
        %v1534 = vadd.f32 %v1532, %v1533
        %v1535 = vrot.slane %v1534, 1
        %v1536 = vadd.f32 %v1534, %v1535
        %1537 = vst [vmem:[%s275] sm:$0x1] %v1536
        %s1538 = sand.u32 %s150, 1
        %s1539 = scalar_lea.sflag [#allocation4], %s1538
        %s1540 = sand.u32 %s150, 1
        %s1541 = scalar_lea.vmem [#allocation5], %s1540
        // Predicated region
        $region45: #{tpu_custom_call.1} parent=39 // pred_check
          %p1542 = pneg %p160
        $region46: #{tpu_custom_call.1} parent=39 // pred_check_branch
          %1544 = sbr.rel (%p1542) target = $region48
        $region47: #{tpu_custom_call.1} parent=39 // pred_region
          %1546 = vsyncadd %s1539, 0
          %s1547 = scalar_lea.hbm %s5, %s22
          %s1549 = sshll.u32 %s1541, 4
          %s1550 = int_to_ptr.vmem [resolvable:$true] %s1549
          %s1551 = sshll.u32 %s1547, 4
          %s1552 = int_to_ptr.hbm [resolvable:$true] %s1551
          %1554 = dma.vmem_to_hbm [thread:$0]  %s1550, 16, %s1552, %s1539
        $region48: #{tpu_custom_call.1} parent=39 // pred_fallthru
          _
      $region40: #{tpu_custom_call.1} parent=5 // pred_fallthru
        _
      %p1555 = scmp.le.s32.totalorder 2, %s17
      // Predicated region
      $region49: #{tpu_custom_call.1} parent=5 // pred_check
        %p1556 = pneg %p1555
      $region50: #{tpu_custom_call.1} parent=5 // pred_check_branch
        %1558 = sbr.rel (%p1556) target = $region52
      $region51: #{tpu_custom_call.1} parent=5 // pred_region
        %s1559 = ssub.s32 %s17, 2
        // Predicated region
        $region53: #{tpu_custom_call.1} parent=51 // pred_check
          %p1560 = pneg %p166
        $region54: #{tpu_custom_call.1} parent=51 // pred_check_branch
          %1562 = sbr.rel (%p1560) target = $region56
        $region55: #{tpu_custom_call.1} parent=51 // pred_region
          %s1563 = sand.u32 %s151, 1
          %s1564 = scalar_lea.sflag [#allocation4], %s1563
          %s1565 = sand.u32 %s151, 1
          %s1566 = scalar_lea.vmem [#allocation5], %s1565
          %1568 = dma.done %s1564, 16
        $region56: #{tpu_custom_call.1} parent=51 // pred_fallthru
          _
      $region52: #{tpu_custom_call.1} parent=5 // pred_fallthru
        _
    $region6: #{tpu_custom_call.1} parent=1 // loop_footer
      %s21 = sadd.s32 1, %s17
    $region7: #{tpu_custom_call.1} parent=1 // loop_footer_branch
      %16 = sbr.rel target = $region3
    $region8: #{tpu_custom_call.1} parent=1 // loop_exit
      _
    %1569 = vsyncpa [#allocation3], 1
    %s1570 = scalar_lea.sflag [#allocation3], 1
    %1571 = vsyncpa %s1570, 1
    %1572 = vsyncpa [#allocation4], 1
    %s1573 = scalar_lea.sflag [#allocation4], 1
    %1574 = vsyncpa %s1573, 1

</llo_original>
